<compile_context>
chip_gen: v5e
topology: v5e:2x2
jax: 0.10.0
libtpu: 0.0.40
codegen_flags: <defaults>
</compile_context>

<pallas_src>
import math

import jax
import jax.numpy as jnp
import numpy as np
from jax.experimental import pallas as pl
from jax.experimental.pallas import tpu as pltpu

# MXU operand dtype for the packed weight slabs.  bf16 is native on the MXU of
# v5e/v6e/v7x; element-wise math stays f32 regardless.  Set to jnp.float32 to
# disable the cast entirely.
WEIGHT_DTYPE = jnp.bfloat16


# ---------------------------------------------------------------------------
# Pallas kernel: full Branch_Cell forward (single invocation, no grid)
# ---------------------------------------------------------------------------
def _branch_cell_kernel(xin_ref, cx_ref, hdb_ref, wxhp_ref, ln_ref, seg_ref,
                        wdbp_ref, bdbp_ref, w2p_ref, b2p_ref, out_ref):
    f32 = jnp.float32
    NH = cx_ref.shape[1]             # naxis * hidden_size
    NA = bdbp_ref.shape[1] // 4      # naxis * ahidden_size
    A = b2p_ref.shape[1] // 2        # ahidden_size
    cdt = wxhp_ref.dtype             # MXU operand dtype (bf16 by default)

    xin = xin_ref[...]               # (1, I + NH)   [x | h_x]        f32
    cx = cx_ref[...]                 # (1, NH)                         f32
    hdb = hdb_ref[...]               # (1, A)                          f32

    # ---- all branch gates, all axes: ONE wide matmul ------------------------
    # column layout (axis-minor inside each block):
    #   [i_pre (NH) | g_pre (NH) | o_pre (NH) | f_x (NH) | f_h (NH)]
    # i/g/o blocks already contain (x-term + h-term) via the contraction.
    pre = jnp.dot(xin.astype(cdt), wxhp_ref[...],
                  preferred_element_type=f32)                      # (1, 5*NH)

    ig_p = jax.nn.sigmoid(pre[:, 0:NH])
    gg_t = jnp.tanh(pre[:, NH:2 * NH])
    og_t = jax.nn.sigmoid(pre[:, 2 * NH:3 * NH])
    a_f = pre[:, 3 * NH:4 * NH]      # forget gate, input term (x @ W_if)
    b_f = pre[:, 4 * NH:5 * NH]      # forget gate, hidden term (h @ W_hf)
    # diff_percent: 1 - |(a - b)/a|   (reciprocal -> EUP, exact)
    fg_p = 1.0 - jnp.abs((a_f - b_f) * pl.reciprocal(a_f, approx=False))

    c_t1 = fg_p * cx + ig_p * gg_t                                 # (1, NH)
    h_t1 = og_t * jnp.tanh(c_t1)                                   # (1, NH)

    # (1, 2*NH) row [h_m | c_m]; reused for the output store below.
    hc = jnp.concatenate([h_t1, c_t1], axis=1)

    # ---- per-axis LayerNorm for BOTH h and c, lane-resident ------------------
    # seg is block-diagonal (2*naxis blocks of H) filled with 1/H, so one
    # matmul yields every per-segment mean, a second the per-segment variance.
    seg = seg_ref[...]                                             # (2NH, 2NH) f32
    gamma = ln_ref[0:1, :]                                         # (1, 2NH)
    beta = ln_ref[1:2, :]                                          # (1, 2NH)
    mu = jnp.dot(hc, seg, preferred_element_type=f32)
    d = hc - mu
    var = jnp.dot(d * d, seg, preferred_element_type=f32)
    # torch.nn.LayerNorm semantics: biased variance, eps = 1e-5.
    hc_n = d * jax.lax.rsqrt(var + 1e-5) * gamma + beta            # (1, 2NH)

    # ---- db branch: one fused matmul for the 3 gates + c_t, all axes ---------
    # K layout: [h_norm (NH) | c_norm (NH) | h_db (A)]
    # N layout: [in_gate (NA) | forget_gate (NA) | cell_gate (NA) | c_t (NA)]
    db_in = jnp.concatenate([hc_n, hdb], axis=1).astype(cdt)       # (1, 2NH + A)
    pre_db = (jnp.dot(db_in, wdbp_ref[...], preferred_element_type=f32)
              + bdbp_ref[...])                                     # (1, 4*NA)

    in_db = jax.nn.sigmoid(pre_db[:, 0:NA])
    fn_db = jax.nn.sigmoid(pre_db[:, NA:2 * NA])
    cn_db = jnp.tanh(pre_db[:, 2 * NA:3 * NA])
    c_tp = pre_db[:, 3 * NA:4 * NA]

    i_cell = in_db * c_tp                                          # (1, NA)
    c_cell = fn_db * cn_db + i_cell                                # (1, NA)

    # ---- output projections + reduction over axes inside one contraction -----
    # K layout: [i_cell (NA) | c_cell (NA)];  N layout: [su_c (A) | su_h (A)]
    t_in = jnp.concatenate([i_cell, c_cell], axis=1).astype(cdt)   # (1, 2*NA)
    t12 = (jnp.dot(t_in, w2p_ref[...], preferred_element_type=f32)
           + b2p_ref[...])                                         # (1, 2*A)
    su_c = t12[:, 0:A]
    su_h = t12[:, A:2 * A]
    h_db_new = jax.nn.sigmoid(su_h) * jnp.tanh(su_c)               # (1, A)

    # single lane-dense store: [h_m | c_m | h_db]
    out_ref[...] = jnp.concatenate([hc, h_db_new], axis=1)


# ---------------------------------------------------------------------------
# Parameter packing (done once, host side)
# ---------------------------------------------------------------------------
def pack_params(params, weight_dtype=WEIGHT_DTYPE):
    wx = np.asarray(params["wx"], np.float32)      # (4, N, I, H)  gates [i,f,g,o]
    wh = np.asarray(params["wh"], np.float32)      # (4, N, H, H)
    _, N, I, H = wx.shape
    A = int(params["wdbx"].shape[-1])
    NH, NA = N * H, N * A

    # -- fused branch-gate matmul: rows [x (I) | h_x (NH)],
    #    cols [i_pre | g_pre | o_pre | f_x | f_h], each block NH, axis-minor.
    wxhp = np.zeros((I + NH, 5 * NH), np.float32)
    for blk, g in enumerate((0, 2, 3)):            # i, g, o : summed gates
        for i in range(N):
            c0 = blk * NH + i * H
            wxhp[0:I, c0:c0 + H] = wx[g, i]
            wxhp[I + i * H:I + (i + 1) * H, c0:c0 + H] = wh[g, i]
    for i in range(N):                             # forget gate, kept split
        cx0 = 3 * NH + i * H
        ch0 = 4 * NH + i * H
        wxhp[0:I, cx0:cx0 + H] = wx[1, i]
        wxhp[I + i * H:I + (i + 1) * H, ch0:ch0 + H] = wh[1, i]

    # -- LayerNorm params for the combined (1, 2*NH) row [h | c].
    gamma = np.concatenate([np.asarray(params["ln_gh"], np.float32).reshape(NH),
                            np.asarray(params["ln_gc"], np.float32).reshape(NH)])
    beta = np.concatenate([np.asarray(params["ln_bh"], np.float32).reshape(NH),
                           np.asarray(params["ln_bc"], np.float32).reshape(NH)])
    ln2 = np.stack([gamma, beta], axis=0)          # (2, 2*NH)

    # -- per-segment mean matrix (block-diagonal blocks of 1/H) over [h | c].
    seg2 = np.zeros((2 * NH, 2 * NH), np.float32)
    for i in range(2 * N):
        seg2[i * H:(i + 1) * H, i * H:(i + 1) * H] = 1.0 / H

    # -- fused db projection.
    # rows: [h_norm (NH) | c_norm (NH) | h_db (A)]
    # cols: [in_gate (NA) | forget_gate (NA) | cell_gate (NA) | c_t (NA)], axis-minor.
    wdbx = np.asarray(params["wdbx"], np.float32)  # (3, N, H, A)
    wdbh = np.asarray(params["wdbh"], np.float32)  # (3, N, A, A)
    wict = np.asarray(params["wict"], np.float32)  # (N, H, A)
    bdbx = np.asarray(params["bdbx"], np.float32)  # (3, N, A)
    bdbh = np.asarray(params["bdbh"], np.float32)  # (3, N, A)
    wdbp = np.zeros((2 * NH + A, 4 * NA), np.float32)
    bdbp = np.zeros((1, 4 * NA), np.float32)
    for g in range(3):
        for i in range(N):
            c0 = g * NA + i * A
            wdbp[i * H:(i + 1) * H, c0:c0 + A] = wdbx[g, i]        # h_norm rows
            wdbp[2 * NH:2 * NH + A, c0:c0 + A] = wdbh[g, i]        # h_db rows
            bdbp[0, c0:c0 + A] = bdbx[g, i] + bdbh[g, i]
    for i in range(N):
        c0 = 3 * NA + i * A
        wdbp[NH + i * H:NH + (i + 1) * H, c0:c0 + A] = wict[i]     # c_norm rows

    # -- fused output projection + axis reduction.
    # rows: [i_cell (NA) | c_cell (NA)];  cols: [su_c (A) | su_h (A)]
    wilc = np.asarray(params["wilc"], np.float32)  # (N, A, A)
    wilh = np.asarray(params["wilh"], np.float32)
    w2p = np.zeros((2 * NA, 2 * A), np.float32)
    for i in range(N):
        w2p[i * A:(i + 1) * A, 0:A] = wilc[i]
        w2p[NA + i * A:NA + (i + 1) * A, A:2 * A] = wilh[i]
    b2p = np.concatenate([np.asarray(params["bilc"], np.float32).sum(0),
                          np.asarray(params["bilh"], np.float32).sum(0)]).reshape(1, 2 * A)

    return {
        "wxhp": jnp.asarray(wxhp).astype(weight_dtype),
        "ln2": jnp.asarray(ln2),
        "seg2": jnp.asarray(seg2),
        "wdbp": jnp.asarray(wdbp).astype(weight_dtype),
        "bdbp": jnp.asarray(bdbp),
        "w2p": jnp.asarray(w2p).astype(weight_dtype),
        "b2p": jnp.asarray(b2p),
    }


# ---------------------------------------------------------------------------
# Wrapper
# ---------------------------------------------------------------------------
def branch_cell_forward(packed, x, branch_state, db_state, *,
                        naxis, hidden_size, ahidden_size):
    """Pallas-backed Branch_Cell.forward (sync=True path)."""
    hx, cx = branch_state
    NH = naxis * hidden_size
    A = ahidden_size

    xin = jnp.concatenate([x.reshape(1, -1), hx.reshape(1, NH)],
                          axis=1).astype(jnp.float32)              # (1, I+NH)
    cx2 = cx.reshape(1, NH).astype(jnp.float32)
    hdb2 = db_state.reshape(1, A).astype(jnp.float32)

    vmem = pl.BlockSpec(memory_space=pltpu.MemorySpace.VMEM)
    inputs = (xin, cx2, hdb2, packed["wxhp"], packed["ln2"], packed["seg2"],
              packed["wdbp"], packed["bdbp"], packed["w2p"], packed["b2p"])

    out = pl.pallas_call(
        _branch_cell_kernel,
        out_shape=jax.ShapeDtypeStruct((1, 2 * NH + A), jnp.float32),
        in_specs=[vmem] * len(inputs),
        out_specs=vmem,
    )(*inputs)

    h_m = out[0, 0:NH].reshape(naxis, hidden_size)
    c_m = out[0, NH:2 * NH].reshape(naxis, hidden_size)
    h_db = out[0, 2 * NH:]
    return (h_m, c_m), h_db


# ---------------------------------------------------------------------------
# Pure-JAX reference (mirrors the PyTorch forward; matmul operands cast to the
# same MXU dtype as the kernel so the comparison is apples-to-apples)
# ---------------------------------------------------------------------------
def branch_cell_reference(params, x, branch_state, db_state, weight_dtype=WEIGHT_DTYPE):
    hx_all, cx_all = branch_state
    naxis, _ = hx_all.shape
    A = db_state.shape[-1]
    x2 = x.reshape(1, -1).astype(jnp.float32)
    hdb = db_state.reshape(1, -1).astype(jnp.float32)

    def mdot(a, w):
        return jnp.dot(a.astype(weight_dtype), w.astype(weight_dtype),
                       preferred_element_type=jnp.float32)

    hm_list, cm_list = [], []
    for i in range(naxis):
        hx = hx_all[i:i + 1].astype(jnp.float32)
        cx = cx_all[i:i + 1].astype(jnp.float32)
        a = mdot(x2, params["wx"][1, i])
        b = mdot(hx, params["wh"][1, i])
        fg = 1.0 - jnp.abs((a - b) / a)
        ig = jax.nn.sigmoid(mdot(x2, params["wx"][0, i]) + mdot(hx, params["wh"][0, i]))
        gg = jnp.tanh(mdot(x2, params["wx"][2, i]) + mdot(hx, params["wh"][2, i]))
        og = jax.nn.sigmoid(mdot(x2, params["wx"][3, i]) + mdot(hx, params["wh"][3, i]))
        c1 = fg * cx + ig * gg
        h1 = og * jnp.tanh(c1)
        hm_list.append(h1)
        cm_list.append(c1)
    hm = jnp.concatenate(hm_list, axis=0)
    cm = jnp.concatenate(cm_list, axis=0)

    def ln(v, g, bta):
        mu = v.mean(-1, keepdims=True)
        var = ((v - mu) ** 2).mean(-1, keepdims=True)
        return (v - mu) / jnp.sqrt(var + 1e-5) * g + bta

    su_h = jnp.zeros((1, A), jnp.float32)
    su_c = jnp.zeros((1, A), jnp.float32)
    for i in range(naxis):
        h_t = ln(hm[i:i + 1], params["ln_gh"][i:i + 1], params["ln_bh"][i:i + 1])
        c_t = mdot(ln(cm[i:i + 1], params["ln_gc"][i:i + 1], params["ln_bc"][i:i + 1]),
                   params["wict"][i])

        def gate(g):
            return (mdot(h_t, params["wdbx"][g, i]) + mdot(hdb, params["wdbh"][g, i])
                    + params["bdbx"][g, i] + params["bdbh"][g, i])

        in_db = jax.nn.sigmoid(gate(0))
        fn_db = jax.nn.sigmoid(gate(1))
        cn_db = jnp.tanh(gate(2))
        i_cell = in_db * c_t
        c_cell = fn_db * cn_db + i_cell
        su_c = su_c + mdot(i_cell, params["wilc"][i]) + params["bilc"][i]
        su_h = su_h + mdot(c_cell, params["wilh"][i]) + params["bilh"][i]

    return (hm, cm), (jax.nn.sigmoid(su_h) * jnp.tanh(su_c)).reshape(-1)


# ---------------------------------------------------------------------------
# Deterministic parameter init.  The torch module uses xavier-uniform for >=2D
# weights and zeros for 1-D biases / default LayerNorm affine; here the 1-D
# params get small random values so the bias / LayerNorm packing paths are
# actually exercised by the test.
# ---------------------------------------------------------------------------
def init_params(key, input_size, hidden_size, ahidden_size, naxis):
    def xavier(k, shape):
        fan_in, fan_out = shape[-2], shape[-1]
        bound = math.sqrt(6.0 / (fan_in + fan_out))
        return jax.random.uniform(k, shape, jnp.float32, -bound, bound)

    def small(k, shape):
        return 0.1 * jax.random.normal(k, shape, jnp.float32)

    ks = jax.random.split(key, 15)
    return {
        "wx": xavier(ks[0], (4, naxis, input_size, hidden_size)),
        "wh": xavier(ks[1], (4, naxis, hidden_size, hidden_size)),
        "ln_gh": 1.0 + small(ks[2], (naxis, hidden_size)),
        "ln_bh": small(ks[3], (naxis, hidden_size)),
        "ln_gc": 1.0 + small(ks[4], (naxis, hidden_size)),
        "ln_bc": small(ks[5], (naxis, hidden_size)),
        "wdbx": xavier(ks[6], (3, naxis, hidden_size, ahidden_size)),
        "wdbh": xavier(ks[7], (3, naxis, ahidden_size, ahidden_size)),
        "bdbx": small(ks[8], (3, naxis, ahidden_size)),
        "bdbh": small(ks[9], (3, naxis, ahidden_size)),
        "wict": xavier(ks[10], (naxis, hidden_size, ahidden_size)),
        "wilc": xavier(ks[11], (naxis, ahidden_size, ahidden_size)),
        "bilc": small(ks[12], (naxis, ahidden_size)),
        "wilh": xavier(ks[13], (naxis, ahidden_size, ahidden_size)),
        "bilh": small(ks[14], (naxis, ahidden_size)),
    }


if __name__ == "__main__":
    input_size, hidden_size, ahidden_size, naxis = 16, 32, 32, 4

    key = jax.random.PRNGKey(0)
    k_par, k_x, k_h, k_c, k_db = jax.random.split(key, 5)

    params = init_params(k_par, input_size, hidden_size, ahidden_size, naxis)
    packed = pack_params(params, weight_dtype=WEIGHT_DTYPE)

    x = jax.random.normal(k_x, (input_size,), jnp.float32)
    h0 = jax.random.normal(k_h, (naxis, hidden_size), jnp.float32)
    c0 = jax.random.normal(k_c, (naxis, hidden_size), jnp.float32)
    db0 = jax.random.normal(k_db, (ahidden_size,), jnp.float32)

    (h_m, c_m), h_db = branch_cell_forward(
        packed, x, (h0, c0), db0,
        naxis=naxis, hidden_size=hidden_size, ahidden_size=ahidden_size)
    jax.block_until_ready((h_m, c_m, h_db))

    (h_m_r, c_m_r), h_db_r = branch_cell_reference(params, x, (h0, c0), db0,
                                                   weight_dtype=WEIGHT_DTYPE)
    np.testing.assert_allclose(np.asarray(h_m), np.asarray(h_m_r), rtol=1e-2, atol=5e-3)
    np.testing.assert_allclose(np.asarray(c_m), np.asarray(c_m_r), rtol=1e-2, atol=5e-3)
    np.testing.assert_allclose(np.asarray(h_db), np.asarray(h_db_r), rtol=1e-2, atol=5e-3)

    print("KERNEL_OK")
</pallas_src>

<mosaic_0001>
module attributes {stable_mosaic.version = 11 : i64} {
  func.func @_branch_cell_kernel(%arg0: memref<1x144xf32, #tpu.memory_space<vmem>>, %arg1: memref<1x128xf32, #tpu.memory_space<vmem>>, %arg2: memref<1x32xf32, #tpu.memory_space<vmem>>, %arg3: memref<144x640xbf16, #tpu.memory_space<vmem>>, %arg4: memref<2x256xf32, #tpu.memory_space<vmem>>, %arg5: memref<256x256xf32, #tpu.memory_space<vmem>>, %arg6: memref<288x512xbf16, #tpu.memory_space<vmem>>, %arg7: memref<1x512xf32, #tpu.memory_space<vmem>>, %arg8: memref<256x64xbf16, #tpu.memory_space<vmem>>, %arg9: memref<1x64xf32, #tpu.memory_space<vmem>>, %arg10: memref<1x288xf32, #tpu.memory_space<vmem>>) attributes {dimension_semantics = [], scalar_prefetch = 0 : i64, scratch_operands = 0 : i64, tpu.core_type = #tpu.core_type<tc>} {
    %c0 = arith.constant 0 : index
    %c0_0 = arith.constant 0 : index
    %0 = vector.load %arg0[%c0, %c0_0] : memref<1x144xf32, #tpu.memory_space<vmem>>, vector<1x144xf32>
    %c0_1 = arith.constant 0 : index
    %c0_2 = arith.constant 0 : index
    %1 = vector.load %arg1[%c0_1, %c0_2] : memref<1x128xf32, #tpu.memory_space<vmem>>, vector<1x128xf32>
    %c0_3 = arith.constant 0 : index
    %c0_4 = arith.constant 0 : index
    %2 = vector.load %arg2[%c0_3, %c0_4] : memref<1x32xf32, #tpu.memory_space<vmem>>, vector<1x32xf32>
    %3 = arith.truncf %0 : vector<1x144xf32> to vector<1x144xbf16>
    %c0_5 = arith.constant 0 : index
    %c0_6 = arith.constant 0 : index
    %4 = vector.load %arg3[%c0_5, %c0_6] : memref<144x640xbf16, #tpu.memory_space<vmem>>, vector<144x640xbf16>
    %cst = arith.constant dense<0.000000e+00> : vector<1x640xf32>
    %5 = tpu.matmul %3, %4, %cst {dimension_numbers = #tpu.dot_dimension_numbers<[1], [0], [0], [1], [0, 0, 1, 1], [], []>} : vector<1x144xbf16>, vector<144x640xbf16>, vector<1x640xf32> -> vector<1x640xf32>
    %6 = vector.extract_strided_slice %5 {offsets = [0, 0], sizes = [1, 128], strides = [1, 1]} : vector<1x640xf32> to vector<1x128xf32>
    %7 = arith.negf %6 : vector<1x128xf32>
    %8 = math.exp %7 : vector<1x128xf32>
    %cst_7 = arith.constant 1.000000e+00 : f32
    %9 = vector.broadcast %cst_7 : f32 to vector<1x128xf32>
    %10 = arith.addf %9, %8 : vector<1x128xf32>
    %11 = arith.divf %9, %10 : vector<1x128xf32>
    %12 = vector.extract_strided_slice %5 {offsets = [0, 128], sizes = [1, 128], strides = [1, 1]} : vector<1x640xf32> to vector<1x128xf32>
    %13 = math.tanh %12 : vector<1x128xf32>
    %14 = vector.extract_strided_slice %5 {offsets = [0, 256], sizes = [1, 128], strides = [1, 1]} : vector<1x640xf32> to vector<1x128xf32>
    %15 = arith.negf %14 : vector<1x128xf32>
    %16 = math.exp %15 : vector<1x128xf32>
    %cst_8 = arith.constant 1.000000e+00 : f32
    %17 = vector.broadcast %cst_8 : f32 to vector<1x128xf32>
    %18 = arith.addf %17, %16 : vector<1x128xf32>
    %19 = arith.divf %17, %18 : vector<1x128xf32>
    %20 = vector.extract_strided_slice %5 {offsets = [0, 384], sizes = [1, 128], strides = [1, 1]} : vector<1x640xf32> to vector<1x128xf32>
    %21 = vector.extract_strided_slice %5 {offsets = [0, 512], sizes = [1, 128], strides = [1, 1]} : vector<1x640xf32> to vector<1x128xf32>
    %22 = arith.subf %20, %21 : vector<1x128xf32>
    %23 = tpu.reciprocal %20 : vector<1x128xf32> -> vector<1x128xf32>
    %24 = arith.mulf %22, %23 : vector<1x128xf32>
    %25 = math.absf %24 : vector<1x128xf32>
    %cst_9 = arith.constant 1.000000e+00 : f32
    %26 = vector.broadcast %cst_9 : f32 to vector<1x128xf32>
    %27 = arith.subf %26, %25 : vector<1x128xf32>
    %28 = arith.mulf %27, %1 : vector<1x128xf32>
    %29 = arith.mulf %11, %13 : vector<1x128xf32>
    %30 = arith.addf %28, %29 : vector<1x128xf32>
    %31 = math.tanh %30 : vector<1x128xf32>
    %32 = arith.mulf %19, %31 : vector<1x128xf32>
    %33 = tpu.concatenate %32, %30 in 1 : vector<1x128xf32>, vector<1x128xf32> -> vector<1x256xf32>
    %c0_10 = arith.constant 0 : index
    %c0_11 = arith.constant 0 : index
    %34 = vector.load %arg5[%c0_10, %c0_11] : memref<256x256xf32, #tpu.memory_space<vmem>>, vector<256x256xf32>
    %c0_12 = arith.constant 0 : index
    %c0_13 = arith.constant 0 : index
    %35 = vector.load %arg4[%c0_12, %c0_13] : memref<2x256xf32, #tpu.memory_space<vmem>>, vector<1x256xf32>
    %c1 = arith.constant 1 : index
    %c0_14 = arith.constant 0 : index
    %36 = vector.load %arg4[%c1, %c0_14] : memref<2x256xf32, #tpu.memory_space<vmem>>, vector<1x256xf32>
    %cst_15 = arith.constant dense<0.000000e+00> : vector<1x256xf32>
    %37 = tpu.matmul %33, %34, %cst_15 {dimension_numbers = #tpu.dot_dimension_numbers<[1], [0], [0], [1], [0, 0, 1, 1], [], []>} : vector<1x256xf32>, vector<256x256xf32>, vector<1x256xf32> -> vector<1x256xf32>
    %38 = arith.subf %33, %37 : vector<1x256xf32>
    %39 = arith.mulf %38, %38 : vector<1x256xf32>
    %cst_16 = arith.constant dense<0.000000e+00> : vector<1x256xf32>
    %40 = tpu.matmul %39, %34, %cst_16 {dimension_numbers = #tpu.dot_dimension_numbers<[1], [0], [0], [1], [0, 0, 1, 1], [], []>} : vector<1x256xf32>, vector<256x256xf32>, vector<1x256xf32> -> vector<1x256xf32>
    %cst_17 = arith.constant 9.99999974E-6 : f32
    %41 = vector.broadcast %cst_17 : f32 to vector<1x256xf32>
    %42 = arith.addf %40, %41 : vector<1x256xf32>
    %43 = math.rsqrt %42 : vector<1x256xf32>
    %44 = arith.mulf %38, %43 : vector<1x256xf32>
    %45 = arith.mulf %44, %35 : vector<1x256xf32>
    %46 = arith.addf %45, %36 : vector<1x256xf32>
    %47 = tpu.concatenate %46, %2 in 1 : vector<1x256xf32>, vector<1x32xf32> -> vector<1x288xf32>
    %48 = arith.truncf %47 : vector<1x288xf32> to vector<1x288xbf16>
    %c0_18 = arith.constant 0 : index
    %c0_19 = arith.constant 0 : index
    %49 = vector.load %arg6[%c0_18, %c0_19] : memref<288x512xbf16, #tpu.memory_space<vmem>>, vector<288x512xbf16>
    %cst_20 = arith.constant dense<0.000000e+00> : vector<1x512xf32>
    %50 = tpu.matmul %48, %49, %cst_20 {dimension_numbers = #tpu.dot_dimension_numbers<[1], [0], [0], [1], [0, 0, 1, 1], [], []>} : vector<1x288xbf16>, vector<288x512xbf16>, vector<1x512xf32> -> vector<1x512xf32>
    %c0_21 = arith.constant 0 : index
    %c0_22 = arith.constant 0 : index
    %51 = vector.load %arg7[%c0_21, %c0_22] : memref<1x512xf32, #tpu.memory_space<vmem>>, vector<1x512xf32>
    %52 = arith.addf %50, %51 : vector<1x512xf32>
    %53 = vector.extract_strided_slice %52 {offsets = [0, 0], sizes = [1, 128], strides = [1, 1]} : vector<1x512xf32> to vector<1x128xf32>
    %54 = arith.negf %53 : vector<1x128xf32>
    %55 = math.exp %54 : vector<1x128xf32>
    %cst_23 = arith.constant 1.000000e+00 : f32
    %56 = vector.broadcast %cst_23 : f32 to vector<1x128xf32>
    %57 = arith.addf %56, %55 : vector<1x128xf32>
    %58 = arith.divf %56, %57 : vector<1x128xf32>
    %59 = vector.extract_strided_slice %52 {offsets = [0, 128], sizes = [1, 128], strides = [1, 1]} : vector<1x512xf32> to vector<1x128xf32>
    %60 = arith.negf %59 : vector<1x128xf32>
    %61 = math.exp %60 : vector<1x128xf32>
    %cst_24 = arith.constant 1.000000e+00 : f32
    %62 = vector.broadcast %cst_24 : f32 to vector<1x128xf32>
    %63 = arith.addf %62, %61 : vector<1x128xf32>
    %64 = arith.divf %62, %63 : vector<1x128xf32>
    %65 = vector.extract_strided_slice %52 {offsets = [0, 256], sizes = [1, 128], strides = [1, 1]} : vector<1x512xf32> to vector<1x128xf32>
    %66 = math.tanh %65 : vector<1x128xf32>
    %67 = vector.extract_strided_slice %52 {offsets = [0, 384], sizes = [1, 128], strides = [1, 1]} : vector<1x512xf32> to vector<1x128xf32>
    %68 = arith.mulf %58, %67 : vector<1x128xf32>
    %69 = arith.mulf %64, %66 : vector<1x128xf32>
    %70 = arith.addf %69, %68 : vector<1x128xf32>
    %71 = tpu.concatenate %68, %70 in 1 : vector<1x128xf32>, vector<1x128xf32> -> vector<1x256xf32>
    %72 = arith.truncf %71 : vector<1x256xf32> to vector<1x256xbf16>
    %c0_25 = arith.constant 0 : index
    %c0_26 = arith.constant 0 : index
    %73 = vector.load %arg8[%c0_25, %c0_26] : memref<256x64xbf16, #tpu.memory_space<vmem>>, vector<256x64xbf16>
    %cst_27 = arith.constant dense<0.000000e+00> : vector<1x64xf32>
    %74 = tpu.matmul %72, %73, %cst_27 {dimension_numbers = #tpu.dot_dimension_numbers<[1], [0], [0], [1], [0, 0, 1, 1], [], []>} : vector<1x256xbf16>, vector<256x64xbf16>, vector<1x64xf32> -> vector<1x64xf32>
    %c0_28 = arith.constant 0 : index
    %c0_29 = arith.constant 0 : index
    %75 = vector.load %arg9[%c0_28, %c0_29] : memref<1x64xf32, #tpu.memory_space<vmem>>, vector<1x64xf32>
    %76 = arith.addf %74, %75 : vector<1x64xf32>
    %77 = vector.extract_strided_slice %76 {offsets = [0, 0], sizes = [1, 32], strides = [1, 1]} : vector<1x64xf32> to vector<1x32xf32>
    %78 = vector.extract_strided_slice %76 {offsets = [0, 32], sizes = [1, 32], strides = [1, 1]} : vector<1x64xf32> to vector<1x32xf32>
    %79 = arith.negf %78 : vector<1x32xf32>
    %80 = math.exp %79 : vector<1x32xf32>
    %cst_30 = arith.constant 1.000000e+00 : f32
    %81 = vector.broadcast %cst_30 : f32 to vector<1x32xf32>
    %82 = arith.addf %81, %80 : vector<1x32xf32>
    %83 = arith.divf %81, %82 : vector<1x32xf32>
    %84 = math.tanh %77 : vector<1x32xf32>
    %85 = arith.mulf %83, %84 : vector<1x32xf32>
    %86 = tpu.concatenate %33, %85 in 1 : vector<1x256xf32>, vector<1x32xf32> -> vector<1x288xf32>
    %c0_31 = arith.constant 0 : index
    %c0_32 = arith.constant 0 : index
    %87 = vector.load %arg10[%c0_31, %c0_32] : memref<1x288xf32, #tpu.memory_space<vmem>>, vector<1x288xf32>
    tpu.vector_store %arg10[%c0_31, %c0_32], %86 {strides = array<i32>} : memref<1x288xf32, #tpu.memory_space<vmem>>, vector<1x288xf32>,
    return
  }
}

</mosaic_0001>

<llo_original>
// kernel: tpu_custom_call.1
$region0: #{tpu_custom_call.1}
  #allocation0 [shape = 'u32[]', space=smem, size = 0x4, offset = 0x4, fixed_abs, tag = 'smem constant byte address 0x4 - core index']
  #allocation1 [shape = 'u32[72,128]{1,0:T(1,128)}', space=vmem, size = 0x9000, scoped, tag = 'internal scratch']
  %s0 = inlined_call_operand.vmem [shape: f32[1,144], index: 0, kind: input, shape index: {}]
  %s1 = inlined_call_operand.vmem [shape: f32[1,128], index: 1, kind: input, shape index: {}]
  %s2 = inlined_call_operand.vmem [shape: f32[1,32], index: 2, kind: input, shape index: {}]
  %s3 = inlined_call_operand.hbm [shape: bf16[144,640], index: 3, kind: input, shape index: {}]
  %s4 = inlined_call_operand.vmem [shape: f32[2,256], index: 4, kind: input, shape index: {}]
  %s5 = inlined_call_operand.hbm [shape: f32[256,256], index: 5, kind: input, shape index: {}]
  %s6 = inlined_call_operand.hbm [shape: bf16[288,512], index: 6, kind: input, shape index: {}]
  %s7 = inlined_call_operand.vmem [shape: f32[1,512], index: 7, kind: input, shape index: {}]
  %s8 = inlined_call_operand.vmem [shape: bf16[256,64], index: 8, kind: input, shape index: {}]
  %s9 = inlined_call_operand.vmem [shape: f32[1,64], index: 9, kind: input, shape index: {}]
  %s10 = inlined_call_operand.hbm [shape: f32[1,288], index: 10, kind: output, shape index: {}]
  %s11 = sld [smem:[#allocation0]]
  $region62: #{tpu_custom_call.1} parent=0
    _
  %s13 = ssub.s32 1, %s11
  %s14 = scalar_select 0, %s13, %s11
  $region1: #{tpu_custom_call.1} parent=0
    #allocation2 [shape = 'u8[184320]{0}', space=vmem, size = 0x2d000, scoped, tag = 'input window, operand 3, single buffered']
    #allocation3 [shape = 's32[1]{0}', space=sflag, size = 0x4, scoped, tag = 'scoped memory for tpu_custom_call.1']
    #allocation4 [shape = 's32[1]{0}', space=sflag, size = 0x4, scoped, tag = 'scoped memory for tpu_custom_call.1']
    #allocation5 [shape = 'u8[262144]{0}', space=vmem, size = 0x40000, scoped, tag = 'input window, operand 5, single buffered']
    #allocation6 [shape = 's32[1]{0}', space=sflag, size = 0x4, scoped, tag = 'scoped memory for tpu_custom_call.1']
    #allocation7 [shape = 'u8[294912]{0}', space=vmem, size = 0x48000, scoped, tag = 'input window, operand 6, single buffered']
    #allocation8 [shape = 'u8[1536]{0}', space=vmem, size = 0x800, scoped, tag = 'output window, operand 0, single buffered']
    %15 = vsyncpa [#allocation3], 0
    %16 = vsyncpa [#allocation6], 0
    %17 = vsyncpa [#allocation4], 0
    // Predicated region
    $region2: #{tpu_custom_call.1} parent=1 // pred_check
      _
    $region3: #{tpu_custom_call.1} parent=1 // pred_check_branch
      %19 = sbr.rel (0) target = $region5
    $region4: #{tpu_custom_call.1} parent=1 // pred_region
      _
    $region5: #{tpu_custom_call.1} parent=1 // pred_fallthru
      _
    // Predicated region
    $region6: #{tpu_custom_call.1} parent=1 // pred_check
      _
    $region7: #{tpu_custom_call.1} parent=1 // pred_check_branch
      %21 = sbr.rel (0) target = $region9
    $region8: #{tpu_custom_call.1} parent=1 // pred_region
      _
    $region9: #{tpu_custom_call.1} parent=1 // pred_fallthru
      _
    // Predicated region
    $region10: #{tpu_custom_call.1} parent=1 // pred_check
      _
    $region11: #{tpu_custom_call.1} parent=1 // pred_check_branch
      %23 = sbr.rel (0) target = $region13
    $region12: #{tpu_custom_call.1} parent=1 // pred_region
      _
    $region13: #{tpu_custom_call.1} parent=1 // pred_fallthru
      _
    // Predicated region
    $region14: #{tpu_custom_call.1} parent=1 // pred_check
      _
    $region15: #{tpu_custom_call.1} parent=1 // pred_check_branch
      %25 = sbr.rel (0) target = $region17
    $region16: #{tpu_custom_call.1} parent=1 // pred_region
      %27 = vsyncadd [#allocation3], 0
      %s28 = sshll.u32 %s3, 4
      %s29 = int_to_ptr.hbm [resolvable:$true] %s28
      %s30 = sshll.u32 [#allocation2], 4
      %s31 = int_to_ptr.vmem [resolvable:$true] %s30
      %36 = dma.hbm_to_vmem [thread:$0]  %s29, 5760, %s31, [#allocation3], 320, 320, 20
    $region17: #{tpu_custom_call.1} parent=1 // pred_fallthru
      _
    // Predicated region
    $region18: #{tpu_custom_call.1} parent=1 // pred_check
      _
    $region19: #{tpu_custom_call.1} parent=1 // pred_check_branch
      %38 = sbr.rel (0) target = $region21
    $region20: #{tpu_custom_call.1} parent=1 // pred_region
      _
    $region21: #{tpu_custom_call.1} parent=1 // pred_fallthru
      _
    // Predicated region
    $region22: #{tpu_custom_call.1} parent=1 // pred_check
      _
    $region23: #{tpu_custom_call.1} parent=1 // pred_check_branch
      %40 = sbr.rel (0) target = $region25
    $region24: #{tpu_custom_call.1} parent=1 // pred_region
      %42 = vsyncadd [#allocation6], 0
      %s43 = sshll.u32 %s5, 4
      %s44 = int_to_ptr.hbm [resolvable:$true] %s43
      %s45 = sshll.u32 [#allocation5], 4
      %s46 = int_to_ptr.vmem [resolvable:$true] %s45
      %51 = dma.hbm_to_vmem [thread:$0]  %s44, 8192, %s46, [#allocation6], 256, 256, 16
    $region25: #{tpu_custom_call.1} parent=1 // pred_fallthru
      _
    // Predicated region
    $region26: #{tpu_custom_call.1} parent=1 // pred_check
      _
    $region27: #{tpu_custom_call.1} parent=1 // pred_check_branch
      %53 = sbr.rel (0) target = $region29
    $region28: #{tpu_custom_call.1} parent=1 // pred_region
      %55 = vsyncadd [#allocation6], 0
      %s56 = sshll.u32 %s6, 4
      %s57 = int_to_ptr.hbm [resolvable:$true] %s56
      %s58 = sshll.u32 [#allocation7], 4
      %s59 = int_to_ptr.vmem [resolvable:$true] %s58
      %64 = dma.hbm_to_vmem [thread:$0]  %s57, 9216, %s59, [#allocation6], 256, 256, 16
    $region29: #{tpu_custom_call.1} parent=1 // pred_fallthru
      _
    // Predicated region
    $region30: #{tpu_custom_call.1} parent=1 // pred_check
      _
    $region31: #{tpu_custom_call.1} parent=1 // pred_check_branch
      %66 = sbr.rel (0) target = $region33
    $region32: #{tpu_custom_call.1} parent=1 // pred_region
      _
    $region33: #{tpu_custom_call.1} parent=1 // pred_fallthru
      _
    // Predicated region
    $region34: #{tpu_custom_call.1} parent=1 // pred_check
      _
    $region35: #{tpu_custom_call.1} parent=1 // pred_check_branch
      %68 = sbr.rel (0) target = $region37
    $region36: #{tpu_custom_call.1} parent=1 // pred_region
      _
    $region37: #{tpu_custom_call.1} parent=1 // pred_fallthru
      _
    // Predicated region
    $region38: #{tpu_custom_call.1} parent=1 // pred_check
      _
    $region39: #{tpu_custom_call.1} parent=1 // pred_check_branch
      %70 = sbr.rel (0) target = $region41
    $region40: #{tpu_custom_call.1} parent=1 // pred_region
      _
    $region41: #{tpu_custom_call.1} parent=1 // pred_fallthru
      _
    // Predicated region
    $region42: #{tpu_custom_call.1} parent=1 // pred_check
      _
    $region43: #{tpu_custom_call.1} parent=1 // pred_check_branch
      %72 = sbr.rel (0) target = $region45
    $region44: #{tpu_custom_call.1} parent=1 // pred_region
      %74 = dma.done [#allocation3], 5760
    $region45: #{tpu_custom_call.1} parent=1 // pred_fallthru
      _
    // Predicated region
    $region46: #{tpu_custom_call.1} parent=1 // pred_check
      _
    $region47: #{tpu_custom_call.1} parent=1 // pred_check_branch
      %76 = sbr.rel (0) target = $region49
    $region48: #{tpu_custom_call.1} parent=1 // pred_region
      %78 = dma.done [#allocation6], 8192
    $region49: #{tpu_custom_call.1} parent=1 // pred_fallthru
      _
    // Predicated region
    $region50: #{tpu_custom_call.1} parent=1 // pred_check
      _
    $region51: #{tpu_custom_call.1} parent=1 // pred_check_branch
      %80 = sbr.rel (0) target = $region53
    $region52: #{tpu_custom_call.1} parent=1 // pred_region
      %82 = dma.done [#allocation6], 9216
    $region53: #{tpu_custom_call.1} parent=1 // pred_fallthru
      _
    %v84 = vld [vmem:[%s0] sm:$0x3]
    %v85 = vld [vmem:[%s1] sm:$0x1]
    %v86 = vld [vmem:[%s2] sm:$0x1]
    %v88 = vperm.slane %v84, 0
    %v89 = vperm.slane %v84, 1
    %v92 = vpack.c.bf16 %v88, %v88
    %v93 = vpack.c.bf16 %v89, %v89
    %v94 = vld [vmem:[#allocation2] sm:$0xff]
    %v95 = vld [vmem:[#allocation2 + $0x8] sm:$0xff]
    %v96 = vld [vmem:[#allocation2 + $0x10] sm:$0xf]
    %v97 = vld [vmem:[#allocation2 + $0x14] sm:$0xff]
    %v98 = vld [vmem:[#allocation2 + $0x1c] sm:$0xff]
    %v99 = vld [vmem:[#allocation2 + $0x24] sm:$0xf]
    %v100 = vld [vmem:[#allocation2 + $0x28] sm:$0xff]
    %v101 = vld [vmem:[#allocation2 + $0x30] sm:$0xff]
    %v102 = vld [vmem:[#allocation2 + $0x38] sm:$0xf]
    %v103 = vld [vmem:[#allocation2 + $0x3c] sm:$0xff]
    %v104 = vld [vmem:[#allocation2 + $0x44] sm:$0xff]
    %v105 = vld [vmem:[#allocation2 + $0x4c] sm:$0xf]
    %v106 = vld [vmem:[#allocation2 + $0x50] sm:$0xff]
    %v107 = vld [vmem:[#allocation2 + $0x58] sm:$0xff]
    %v108 = vld [vmem:[#allocation2 + $0x60] sm:$0xf]
    %v109 = vld [vmem:[#allocation2 + $0x64] sm:$0xff]
    %v110 = vld [vmem:[#allocation2 + $0x6c] sm:$0xff]
    %v111 = vld [vmem:[#allocation2 + $0x74] sm:$0xf]
    %v112 = vld [vmem:[#allocation2 + $0x78] sm:$0xff]
    %v113 = vld [vmem:[#allocation2 + $0x80] sm:$0xff]
    %v114 = vld [vmem:[#allocation2 + $0x88] sm:$0xf]
    %v115 = vld [vmem:[#allocation2 + $0x8c] sm:$0xff]
    %v116 = vld [vmem:[#allocation2 + $0x94] sm:$0xff]
    %v117 = vld [vmem:[#allocation2 + $0x9c] sm:$0xf]
    %v118 = vld [vmem:[#allocation2 + $0xa0] sm:$0xff]
    %v119 = vld [vmem:[#allocation2 + $0xa8] sm:$0xff]
    %v120 = vld [vmem:[#allocation2 + $0xb0] sm:$0xf]
    %v121 = vld [vmem:[#allocation2 + $0xb4] sm:$0xff]
    %v122 = vld [vmem:[#allocation2 + $0xbc] sm:$0xff]
    %v123 = vld [vmem:[#allocation2 + $0xc4] sm:$0xf]
    %v124 = vld [vmem:[#allocation2 + $0xc8] sm:$0xff]
    %v125 = vld [vmem:[#allocation2 + $0xd0] sm:$0xff]
    %v126 = vld [vmem:[#allocation2 + $0xd8] sm:$0xf]
    %v127 = vld [vmem:[#allocation2 + $0xdc] sm:$0xff]
    %v128 = vld [vmem:[#allocation2 + $0xe4] sm:$0xff]
    %v129 = vld [vmem:[#allocation2 + $0xec] sm:$0xf]
    %v130 = vld [vmem:[#allocation2 + $0xf0] sm:$0xff]
    %v131 = vld [vmem:[#allocation2 + $0xf8] sm:$0xff]
    %v132 = vld [vmem:[#allocation2 + $0x100] sm:$0xf]
    %v133 = vld [vmem:[#allocation2 + $0x104] sm:$0xff]
    %v134 = vld [vmem:[#allocation2 + $0x10c] sm:$0xff]
    %v135 = vld [vmem:[#allocation2 + $0x114] sm:$0xf]
    %v136 = vld [vmem:[#allocation2 + $0x118] sm:$0xff]
    %v137 = vld [vmem:[#allocation2 + $0x120] sm:$0xff]
    %v138 = vld [vmem:[#allocation2 + $0x128] sm:$0xf]
    %v139 = vld [vmem:[#allocation2 + $0x12c] sm:$0xff]
    %v140 = vld [vmem:[#allocation2 + $0x134] sm:$0xff]
    %v141 = vld [vmem:[#allocation2 + $0x13c] sm:$0xf]
    %v142 = vld [vmem:[#allocation2 + $0x140] sm:$0xff]
    %v143 = vld [vmem:[#allocation2 + $0x148] sm:$0xff]
    %v144 = vld [vmem:[#allocation2 + $0x150] sm:$0xf]
    %v145 = vld [vmem:[#allocation2 + $0x154] sm:$0xff]
    %v146 = vld [vmem:[#allocation2 + $0x15c] sm:$0xff]
    %v147 = vld [vmem:[#allocation2 + $0x164] sm:$0xf]
    %v202 = vunpack.c.l.b16 %v94
    %v203 = vunpack.c.h.b16 %v94
    %v204 = vunpack.c.l.b16 %v95
    %v205 = vunpack.c.h.b16 %v95
    %v206 = vunpack.c.l.b16 %v96
    %v207 = vunpack.c.l.b16 %v97
    %v208 = vunpack.c.h.b16 %v97
    %v209 = vunpack.c.l.b16 %v98
    %v210 = vunpack.c.h.b16 %v98
    %v211 = vunpack.c.l.b16 %v99
    %v212 = vunpack.c.l.b16 %v100
    %v213 = vunpack.c.h.b16 %v100
    %v214 = vunpack.c.l.b16 %v101
    %v215 = vunpack.c.h.b16 %v101
    %v216 = vunpack.c.l.b16 %v102
    %v217 = vunpack.c.l.b16 %v103
    %v218 = vunpack.c.h.b16 %v103
    %v219 = vunpack.c.l.b16 %v104
    %v220 = vunpack.c.h.b16 %v104
    %v221 = vunpack.c.l.b16 %v105
    %v222 = vunpack.c.l.b16 %v106
    %v223 = vunpack.c.h.b16 %v106
    %v224 = vunpack.c.l.b16 %v107
    %v225 = vunpack.c.h.b16 %v107
    %v226 = vunpack.c.l.b16 %v108
    %v227 = vunpack.c.l.b16 %v109
    %v228 = vunpack.c.h.b16 %v109
    %v229 = vunpack.c.l.b16 %v110
    %v230 = vunpack.c.h.b16 %v110
    %v231 = vunpack.c.l.b16 %v111
    %v232 = vunpack.c.l.b16 %v112
    %v233 = vunpack.c.h.b16 %v112
    %v234 = vunpack.c.l.b16 %v113
    %v235 = vunpack.c.h.b16 %v113
    %v236 = vunpack.c.l.b16 %v114
    %v237 = vunpack.c.l.b16 %v115
    %v238 = vunpack.c.h.b16 %v115
    %v239 = vunpack.c.l.b16 %v116
    %v240 = vunpack.c.h.b16 %v116
    %v241 = vunpack.c.l.b16 %v117
    %v242 = vunpack.c.l.b16 %v118
    %v243 = vunpack.c.h.b16 %v118
    %v244 = vunpack.c.l.b16 %v119
    %v245 = vunpack.c.h.b16 %v119
    %v246 = vunpack.c.l.b16 %v120
    %v247 = vunpack.c.l.b16 %v121
    %v248 = vunpack.c.h.b16 %v121
    %v249 = vunpack.c.l.b16 %v122
    %v250 = vunpack.c.h.b16 %v122
    %v251 = vunpack.c.l.b16 %v123
    %v252 = vunpack.c.l.b16 %v124
    %v253 = vunpack.c.h.b16 %v124
    %v254 = vunpack.c.l.b16 %v125
    %v255 = vunpack.c.h.b16 %v125
    %v256 = vunpack.c.l.b16 %v126
    %v257 = vunpack.c.l.b16 %v127
    %v258 = vunpack.c.h.b16 %v127
    %v259 = vunpack.c.l.b16 %v128
    %v260 = vunpack.c.h.b16 %v128
    %v261 = vunpack.c.l.b16 %v129
    %v262 = vunpack.c.l.b16 %v130
    %v263 = vunpack.c.h.b16 %v130
    %v264 = vunpack.c.l.b16 %v131
    %v265 = vunpack.c.h.b16 %v131
    %v266 = vunpack.c.l.b16 %v132
    %v267 = vunpack.c.l.b16 %v133
    %v268 = vunpack.c.h.b16 %v133
    %v269 = vunpack.c.l.b16 %v134
    %v270 = vunpack.c.h.b16 %v134
    %v271 = vunpack.c.l.b16 %v135
    %v272 = vunpack.c.l.b16 %v136
    %v273 = vunpack.c.h.b16 %v136
    %v274 = vunpack.c.l.b16 %v137
    %v275 = vunpack.c.h.b16 %v137
    %v276 = vunpack.c.l.b16 %v138
    %v277 = vunpack.c.l.b16 %v139
    %v278 = vunpack.c.h.b16 %v139
    %v279 = vunpack.c.l.b16 %v140
    %v280 = vunpack.c.h.b16 %v140
    %v281 = vunpack.c.l.b16 %v141
    %v282 = vunpack.c.l.b16 %v142
    %v283 = vunpack.c.h.b16 %v142
    %v284 = vunpack.c.l.b16 %v143
    %v285 = vunpack.c.h.b16 %v143
    %v286 = vunpack.c.l.b16 %v144
    %v287 = vunpack.c.l.b16 %v145
    %v288 = vunpack.c.h.b16 %v145
    %v289 = vunpack.c.l.b16 %v146
    %v290 = vunpack.c.h.b16 %v146
    %v291 = vunpack.c.l.b16 %v147
    %v292 = vpack.c.b16 %v207, %v202
    %v293 = vpack.c.b16 %v208, %v203
    %v294 = vpack.c.b16 %v209, %v204
    %v295 = vpack.c.b16 %v210, %v205
    %v296 = vpack.c.b16 %v211, %v206
    %v297 = vpack.c.b16 %v217, %v212
    %v298 = vpack.c.b16 %v218, %v213
    %v299 = vpack.c.b16 %v219, %v214
    %v300 = vpack.c.b16 %v220, %v215
    %v301 = vpack.c.b16 %v221, %v216
    %v302 = vpack.c.b16 %v227, %v222
    %v303 = vpack.c.b16 %v228, %v223
    %v304 = vpack.c.b16 %v229, %v224
    %v305 = vpack.c.b16 %v230, %v225
    %v306 = vpack.c.b16 %v231, %v226
    %v307 = vpack.c.b16 %v237, %v232
    %v308 = vpack.c.b16 %v238, %v233
    %v309 = vpack.c.b16 %v239, %v234
    %v310 = vpack.c.b16 %v240, %v235
    %v311 = vpack.c.b16 %v241, %v236
    %v312 = vpack.c.b16 %v247, %v242
    %v313 = vpack.c.b16 %v248, %v243
    %v314 = vpack.c.b16 %v249, %v244
    %v315 = vpack.c.b16 %v250, %v245
    %v316 = vpack.c.b16 %v251, %v246
    %v317 = vpack.c.b16 %v257, %v252
    %v318 = vpack.c.b16 %v258, %v253
    %v319 = vpack.c.b16 %v259, %v254
    %v320 = vpack.c.b16 %v260, %v255
    %v321 = vpack.c.b16 %v261, %v256
    %v322 = vpack.c.b16 %v267, %v262
    %v323 = vpack.c.b16 %v268, %v263
    %v324 = vpack.c.b16 %v269, %v264
    %v325 = vpack.c.b16 %v270, %v265
    %v326 = vpack.c.b16 %v271, %v266
    %v327 = vpack.c.b16 %v277, %v272
    %v328 = vpack.c.b16 %v278, %v273
    %v329 = vpack.c.b16 %v279, %v274
    %v330 = vpack.c.b16 %v280, %v275
    %v331 = vpack.c.b16 %v281, %v276
    %v332 = vpack.c.b16 %v287, %v282
    %v333 = vpack.c.b16 %v288, %v283
    %v334 = vpack.c.b16 %v289, %v284
    %v335 = vpack.c.b16 %v290, %v285
    %v336 = vpack.c.b16 %v291, %v286
    %vm382 = vcmask 130048
    %v384 = vsel %vm382, %v93, 0
    %386 = vmatpush.bf16.msra.mxu0 %v327
    %387 = vmatpush.bf16.msra.mxu0 %v322
    %388 = vmatpush.bf16.msra.mxu0 %v317
    %389 = vmatpush.bf16.msra.mxu0 %v312
    %390 = vmatpush.bf16.msra.mxu0 %v307
    %391 = vmatpush.bf16.msra.mxu0 %v302
    %392 = vmatpush.bf16.msra.mxu0 %v297
    %393 = vmatpush.bf16.msra.mxu0 %v292
    %394 = vmatmul.bf16.gmra.mxu0 %v92
    %v395 = vpop.f32.mrf.mxu0
    %v396 = vadd.f32 0.0, %v395
    %v397 = vpop.f32.mrf.mxu0
    %398 = vdwg.mxu0
    %399 = vmatpush.bf16.msra.mxu0 0
    %400 = vmatpush.bf16.msra.mxu0 0
    %401 = vmatpush.bf16.msra.mxu0 0
    %402 = vmatpush.bf16.msra.mxu0 0
    %403 = vmatpush.bf16.msra.mxu0 0
    %404 = vmatpush.bf16.msra.mxu0 0
    %405 = vmatpush.bf16.msra.mxu0 0
    %406 = vmatpush.bf16.msra.mxu0 %v332
    %407 = vmatmul.bf16.gmra.mxu0 %v384
    %v408 = vpop.f32.mrf.mxu0
    %v409 = vadd.f32 %v396, %v408
    %v410 = vpop.f32.mrf.mxu0
    %411 = vdwg.mxu0
    %412 = vmatpush.bf16.msra.mxu0 %v328
    %413 = vmatpush.bf16.msra.mxu0 %v323
    %414 = vmatpush.bf16.msra.mxu0 %v318
    %415 = vmatpush.bf16.msra.mxu0 %v313
    %416 = vmatpush.bf16.msra.mxu0 %v308
    %417 = vmatpush.bf16.msra.mxu0 %v303
    %418 = vmatpush.bf16.msra.mxu0 %v298
    %419 = vmatpush.bf16.msra.mxu0 %v293
    %420 = vmatmul.bf16.gmra.mxu0 %v92
    %v421 = vpop.f32.mrf.mxu0
    %v422 = vadd.f32 0.0, %v421
    %v423 = vpop.f32.mrf.mxu0
    %424 = vdwg.mxu0
    %425 = vmatpush.bf16.msra.mxu0 0
    %426 = vmatpush.bf16.msra.mxu0 0
    %427 = vmatpush.bf16.msra.mxu0 0
    %428 = vmatpush.bf16.msra.mxu0 0
    %429 = vmatpush.bf16.msra.mxu0 0
    %430 = vmatpush.bf16.msra.mxu0 0
    %431 = vmatpush.bf16.msra.mxu0 0
    %432 = vmatpush.bf16.msra.mxu0 %v333
    %433 = vmatmul.bf16.gmra.mxu0 %v384
    %v434 = vpop.f32.mrf.mxu0
    %v435 = vadd.f32 %v422, %v434
    %v436 = vpop.f32.mrf.mxu0
    %437 = vdwg.mxu0
    %438 = vmatpush.bf16.msra.mxu0 %v329
    %439 = vmatpush.bf16.msra.mxu0 %v324
    %440 = vmatpush.bf16.msra.mxu0 %v319
    %441 = vmatpush.bf16.msra.mxu0 %v314
    %442 = vmatpush.bf16.msra.mxu0 %v309
    %443 = vmatpush.bf16.msra.mxu0 %v304
    %444 = vmatpush.bf16.msra.mxu0 %v299
    %445 = vmatpush.bf16.msra.mxu0 %v294
    %446 = vmatmul.bf16.gmra.mxu0 %v92
    %v447 = vpop.f32.mrf.mxu0
    %v448 = vadd.f32 0.0, %v447
    %v449 = vpop.f32.mrf.mxu0
    %450 = vdwg.mxu0
    %451 = vmatpush.bf16.msra.mxu0 0
    %452 = vmatpush.bf16.msra.mxu0 0
    %453 = vmatpush.bf16.msra.mxu0 0
    %454 = vmatpush.bf16.msra.mxu0 0
    %455 = vmatpush.bf16.msra.mxu0 0
    %456 = vmatpush.bf16.msra.mxu0 0
    %457 = vmatpush.bf16.msra.mxu0 0
    %458 = vmatpush.bf16.msra.mxu0 %v334
    %459 = vmatmul.bf16.gmra.mxu0 %v384
    %v460 = vpop.f32.mrf.mxu0
    %v461 = vadd.f32 %v448, %v460
    %v462 = vpop.f32.mrf.mxu0
    %463 = vdwg.mxu0
    %464 = vmatpush.bf16.msra.mxu0 %v330
    %465 = vmatpush.bf16.msra.mxu0 %v325
    %466 = vmatpush.bf16.msra.mxu0 %v320
    %467 = vmatpush.bf16.msra.mxu0 %v315
    %468 = vmatpush.bf16.msra.mxu0 %v310
    %469 = vmatpush.bf16.msra.mxu0 %v305
    %470 = vmatpush.bf16.msra.mxu0 %v300
    %471 = vmatpush.bf16.msra.mxu0 %v295
    %472 = vmatmul.bf16.gmra.mxu0 %v92
    %v473 = vpop.f32.mrf.mxu0
    %v474 = vadd.f32 0.0, %v473
    %v475 = vpop.f32.mrf.mxu0
    %476 = vdwg.mxu0
    %477 = vmatpush.bf16.msra.mxu0 0
    %478 = vmatpush.bf16.msra.mxu0 0
    %479 = vmatpush.bf16.msra.mxu0 0
    %480 = vmatpush.bf16.msra.mxu0 0
    %481 = vmatpush.bf16.msra.mxu0 0
    %482 = vmatpush.bf16.msra.mxu0 0
    %483 = vmatpush.bf16.msra.mxu0 0
    %484 = vmatpush.bf16.msra.mxu0 %v335
    %485 = vmatmul.bf16.gmra.mxu0 %v384
    %v486 = vpop.f32.mrf.mxu0
    %v487 = vadd.f32 %v474, %v486
    %v488 = vpop.f32.mrf.mxu0
    %489 = vdwg.mxu0
    %490 = vmatpush.bf16.msra.mxu0 %v331
    %491 = vmatpush.bf16.msra.mxu0 %v326
    %492 = vmatpush.bf16.msra.mxu0 %v321
    %493 = vmatpush.bf16.msra.mxu0 %v316
    %494 = vmatpush.bf16.msra.mxu0 %v311
    %495 = vmatpush.bf16.msra.mxu0 %v306
    %496 = vmatpush.bf16.msra.mxu0 %v301
    %497 = vmatpush.bf16.msra.mxu0 %v296
    %498 = vmatmul.bf16.gmra.mxu0 %v92
    %v499 = vpop.f32.mrf.mxu0
    %v500 = vadd.f32 0.0, %v499
    %v501 = vpop.f32.mrf.mxu0
    %502 = vdwg.mxu0
    %503 = vmatpush.bf16.msra.mxu0 0
    %504 = vmatpush.bf16.msra.mxu0 0
    %505 = vmatpush.bf16.msra.mxu0 0
    %506 = vmatpush.bf16.msra.mxu0 0
    %507 = vmatpush.bf16.msra.mxu0 0
    %508 = vmatpush.bf16.msra.mxu0 0
    %509 = vmatpush.bf16.msra.mxu0 0
    %510 = vmatpush.bf16.msra.mxu0 %v336
    %511 = vmatmul.bf16.gmra.mxu0 %v384
    %v512 = vpop.f32.mrf.mxu0
    %v513 = vadd.f32 %v500, %v512
    %v514 = vpop.f32.mrf.mxu0
    %515 = vdwg.mxu0
    %v516 = vxor.u32 %v409, 2147483648
    %v517 = vmul.f32 %v516, 1.442695
    %v518 = vpow.pop %v517
    %v519 = vadd.f32 %v518, 1.0
    %v520 = vrcp.pop %v519
    %v521 = vmul.f32 %v519, %v520
    %v522 = vsub.f32 1.0, %v521
    %v523 = vmul.f32 %v520, %v522
    %v524 = vadd.f32 %v520, %v523
    %vm525 = vweird.f32 %v519
    %vm526 = vweird.f32 %v520
    %vm527 = vmor %vm525, %vm526
    %v528 = vsel %vm527, %v520, %v524
    %v529 = vand.u32 2147483647, %v519
    %vm530 = vcmp.eq.f32.partialorder %v529, 8.507059e+37
    %v531 = vand.u32 %v519, 2147483648
    %v532 = vor.u32 1.1754944e-38, %v531
    %v533 = vsel %vm530, %v532, %v528
    %v534 = vmul.f32 1.0, %v533
    %v535 = vtanh.pop %v435
    %v536 = vxor.u32 %v461, 2147483648
    %v537 = vmul.f32 %v536, 1.442695
    %v538 = vpow.pop %v537
    %v539 = vadd.f32 %v538, 1.0
    %v540 = vrcp.pop %v539
    %v541 = vmul.f32 %v539, %v540
    %v542 = vsub.f32 1.0, %v541
    %v543 = vmul.f32 %v540, %v542
    %v544 = vadd.f32 %v540, %v543
    %vm545 = vweird.f32 %v539
    %vm546 = vweird.f32 %v540
    %vm547 = vmor %vm545, %vm546
    %v548 = vsel %vm547, %v540, %v544
    %v549 = vand.u32 2147483647, %v539
    %vm550 = vcmp.eq.f32.partialorder %v549, 8.507059e+37
    %v551 = vand.u32 %v539, 2147483648
    %v552 = vor.u32 1.1754944e-38, %v551
    %v553 = vsel %vm550, %v552, %v548
    %v554 = vmul.f32 1.0, %v553
    %v555 = vsub.f32 %v487, %v513
    %v556 = vrcp.pop %v487
    %v557 = vmul.f32 %v487, %v556
    %v558 = vsub.f32 1.0, %v557
    %v559 = vmul.f32 %v556, %v558
    %v560 = vadd.f32 %v556, %v559
    %vm561 = vweird.f32 %v487
    %vm562 = vweird.f32 %v556
    %vm563 = vmor %vm561, %vm562
    %v564 = vsel %vm563, %v556, %v560
    %v565 = vand.u32 2147483647, %v487
    %vm566 = vcmp.eq.f32.partialorder %v565, 8.507059e+37
    %v567 = vand.u32 %v487, 2147483648
    %v568 = vor.u32 1.1754944e-38, %v567
    %v569 = vsel %vm566, %v568, %v564
    %v570 = vmul.f32 %v555, %v569
    %v571 = vand.u32 2147483647, %v570
    %v572 = vsub.f32 1.0, %v571
    %v573 = vmul.f32 %v572, %v85
    %v574 = vmul.f32 %v534, %v535
    %v575 = vadd.f32 %v573, %v574
    %v576 = vtanh.pop %v575
    %v577 = vmul.f32 %v554, %v576
    %v578 = vld [vmem:[#allocation5] sm:$0xff]
    %v579 = vld [vmem:[#allocation5 + $0x8] sm:$0xff]
    %v580 = vld [vmem:[#allocation5 + $0x10] sm:$0xff]
    %v581 = vld [vmem:[#allocation5 + $0x18] sm:$0xff]
    %v582 = vld [vmem:[#allocation5 + $0x20] sm:$0xff]
    %v583 = vld [vmem:[#allocation5 + $0x28] sm:$0xff]
    %v584 = vld [vmem:[#allocation5 + $0x30] sm:$0xff]
    %v585 = vld [vmem:[#allocation5 + $0x38] sm:$0xff]
    %v586 = vld [vmem:[#allocation5 + $0x40] sm:$0xff]
    %v587 = vld [vmem:[#allocation5 + $0x48] sm:$0xff]
    %v588 = vld [vmem:[#allocation5 + $0x50] sm:$0xff]
    %v589 = vld [vmem:[#allocation5 + $0x58] sm:$0xff]
    %v590 = vld [vmem:[#allocation5 + $0x60] sm:$0xff]
    %v591 = vld [vmem:[#allocation5 + $0x68] sm:$0xff]
    %v592 = vld [vmem:[#allocation5 + $0x70] sm:$0xff]
    %v593 = vld [vmem:[#allocation5 + $0x78] sm:$0xff]
    %v594 = vld [vmem:[#allocation5 + $0x80] sm:$0xff]
    %v595 = vld [vmem:[#allocation5 + $0x88] sm:$0xff]
    %v596 = vld [vmem:[#allocation5 + $0x90] sm:$0xff]
    %v597 = vld [vmem:[#allocation5 + $0x98] sm:$0xff]
    %v598 = vld [vmem:[#allocation5 + $0xa0] sm:$0xff]
    %v599 = vld [vmem:[#allocation5 + $0xa8] sm:$0xff]
    %v600 = vld [vmem:[#allocation5 + $0xb0] sm:$0xff]
    %v601 = vld [vmem:[#allocation5 + $0xb8] sm:$0xff]
    %v602 = vld [vmem:[#allocation5 + $0xc0] sm:$0xff]
    %v603 = vld [vmem:[#allocation5 + $0xc8] sm:$0xff]
    %v604 = vld [vmem:[#allocation5 + $0xd0] sm:$0xff]
    %v605 = vld [vmem:[#allocation5 + $0xd8] sm:$0xff]
    %v606 = vld [vmem:[#allocation5 + $0xe0] sm:$0xff]
    %v607 = vld [vmem:[#allocation5 + $0xe8] sm:$0xff]
    %v608 = vld [vmem:[#allocation5 + $0xf0] sm:$0xff]
    %v609 = vld [vmem:[#allocation5 + $0xf8] sm:$0xff]
    %v610 = vld [vmem:[#allocation5 + $0x100] sm:$0xff]
    %v611 = vld [vmem:[#allocation5 + $0x108] sm:$0xff]
    %v612 = vld [vmem:[#allocation5 + $0x110] sm:$0xff]
    %v613 = vld [vmem:[#allocation5 + $0x118] sm:$0xff]
    %v614 = vld [vmem:[#allocation5 + $0x120] sm:$0xff]
    %v615 = vld [vmem:[#allocation5 + $0x128] sm:$0xff]
    %v616 = vld [vmem:[#allocation5 + $0x130] sm:$0xff]
    %v617 = vld [vmem:[#allocation5 + $0x138] sm:$0xff]
    %v618 = vld [vmem:[#allocation5 + $0x140] sm:$0xff]
    %v619 = vld [vmem:[#allocation5 + $0x148] sm:$0xff]
    %v620 = vld [vmem:[#allocation5 + $0x150] sm:$0xff]
    %v621 = vld [vmem:[#allocation5 + $0x158] sm:$0xff]
    %v622 = vld [vmem:[#allocation5 + $0x160] sm:$0xff]
    %v623 = vld [vmem:[#allocation5 + $0x168] sm:$0xff]
    %v624 = vld [vmem:[#allocation5 + $0x170] sm:$0xff]
    %v625 = vld [vmem:[#allocation5 + $0x178] sm:$0xff]
    %v626 = vld [vmem:[#allocation5 + $0x180] sm:$0xff]
    %v627 = vld [vmem:[#allocation5 + $0x188] sm:$0xff]
    %v628 = vld [vmem:[#allocation5 + $0x190] sm:$0xff]
    %v629 = vld [vmem:[#allocation5 + $0x198] sm:$0xff]
    %v630 = vld [vmem:[#allocation5 + $0x1a0] sm:$0xff]
    %v631 = vld [vmem:[#allocation5 + $0x1a8] sm:$0xff]
    %v632 = vld [vmem:[#allocation5 + $0x1b0] sm:$0xff]
    %v633 = vld [vmem:[#allocation5 + $0x1b8] sm:$0xff]
    %v634 = vld [vmem:[#allocation5 + $0x1c0] sm:$0xff]
    %v635 = vld [vmem:[#allocation5 + $0x1c8] sm:$0xff]
    %v636 = vld [vmem:[#allocation5 + $0x1d0] sm:$0xff]
    %v637 = vld [vmem:[#allocation5 + $0x1d8] sm:$0xff]
    %v638 = vld [vmem:[#allocation5 + $0x1e0] sm:$0xff]
    %v639 = vld [vmem:[#allocation5 + $0x1e8] sm:$0xff]
    %v640 = vld [vmem:[#allocation5 + $0x1f0] sm:$0xff]
    %v641 = vld [vmem:[#allocation5 + $0x1f8] sm:$0xff]
    %v642 = vld [vmem:[%s4] ss:$2 sm:$0x3]
    %s643 = scalar_lea.vmem %s4, 1
    %v644 = vld [vmem:[%s643] ss:$2 sm:$0x3]
    %645 = vmatpush.msra.mxu0 %v608
    %646 = vmatpush.msra.mxu0 %v606
    %647 = vmatpush.msra.mxu0 %v604
    %648 = vmatpush.msra.mxu0 %v602
    %649 = vmatpush.msra.mxu0 %v600
    %650 = vmatpush.msra.mxu0 %v598
    %651 = vmatpush.msra.mxu0 %v596
    %652 = vmatpush.msra.mxu0 %v594
    %653 = vmatpush.msra.mxu0 %v592
    %654 = vmatpush.msra.mxu0 %v590
    %655 = vmatpush.msra.mxu0 %v588
    %656 = vmatpush.msra.mxu0 %v586
    %657 = vmatpush.msra.mxu0 %v584
    %658 = vmatpush.msra.mxu0 %v582
    %659 = vmatpush.msra.mxu0 %v580
    %660 = vmatpush.msra.mxu0 %v578
    %661 = vmatmul.f32.gmra.mxu0 %v577
    %v662 = vpop.f32.mrf.mxu0
    %v663 = vadd.f32 0.0, %v662
    %664 = vdwg.mxu0
    %665 = vmatpush.msra.mxu0 %v640
    %666 = vmatpush.msra.mxu0 %v638
    %667 = vmatpush.msra.mxu0 %v636
    %668 = vmatpush.msra.mxu0 %v634
    %669 = vmatpush.msra.mxu0 %v632
    %670 = vmatpush.msra.mxu0 %v630
    %671 = vmatpush.msra.mxu0 %v628
    %672 = vmatpush.msra.mxu0 %v626
    %673 = vmatpush.msra.mxu0 %v624
    %674 = vmatpush.msra.mxu0 %v622
    %675 = vmatpush.msra.mxu0 %v620
    %676 = vmatpush.msra.mxu0 %v618
    %677 = vmatpush.msra.mxu0 %v616
    %678 = vmatpush.msra.mxu0 %v614
    %679 = vmatpush.msra.mxu0 %v612
    %680 = vmatpush.msra.mxu0 %v610
    %681 = vmatmul.f32.gmra.mxu0 %v575
    %v682 = vpop.f32.mrf.mxu0
    %v683 = vadd.f32 %v663, %v682
    %684 = vdwg.mxu0
    %685 = vmatpush.msra.mxu0 %v609
    %686 = vmatpush.msra.mxu0 %v607
    %687 = vmatpush.msra.mxu0 %v605
    %688 = vmatpush.msra.mxu0 %v603
    %689 = vmatpush.msra.mxu0 %v601
    %690 = vmatpush.msra.mxu0 %v599
    %691 = vmatpush.msra.mxu0 %v597
    %692 = vmatpush.msra.mxu0 %v595
    %693 = vmatpush.msra.mxu0 %v593
    %694 = vmatpush.msra.mxu0 %v591
    %695 = vmatpush.msra.mxu0 %v589
    %696 = vmatpush.msra.mxu0 %v587
    %697 = vmatpush.msra.mxu0 %v585
    %698 = vmatpush.msra.mxu0 %v583
    %699 = vmatpush.msra.mxu0 %v581
    %700 = vmatpush.msra.mxu0 %v579
    %701 = vmatmul.f32.gmra.mxu0 %v577
    %v702 = vpop.f32.mrf.mxu0
    %v703 = vadd.f32 0.0, %v702
    %704 = vdwg.mxu0
    %705 = vmatpush.msra.mxu0 %v641
    %706 = vmatpush.msra.mxu0 %v639
    %707 = vmatpush.msra.mxu0 %v637
    %708 = vmatpush.msra.mxu0 %v635
    %709 = vmatpush.msra.mxu0 %v633
    %710 = vmatpush.msra.mxu0 %v631
    %711 = vmatpush.msra.mxu0 %v629
    %712 = vmatpush.msra.mxu0 %v627
    %713 = vmatpush.msra.mxu0 %v625
    %714 = vmatpush.msra.mxu0 %v623
    %715 = vmatpush.msra.mxu0 %v621
    %716 = vmatpush.msra.mxu0 %v619
    %717 = vmatpush.msra.mxu0 %v617
    %718 = vmatpush.msra.mxu0 %v615
    %719 = vmatpush.msra.mxu0 %v613
    %720 = vmatpush.msra.mxu0 %v611
    %721 = vmatmul.f32.gmra.mxu0 %v575
    %v722 = vpop.f32.mrf.mxu0
    %v723 = vadd.f32 %v703, %v722
    %724 = vdwg.mxu0
    %v725 = vsub.f32 %v577, %v683
    %v726 = vsub.f32 %v575, %v723
    %v727 = vmul.f32 %v725, %v725
    %v728 = vmul.f32 %v726, %v726
    %729 = vmatpush.msra.mxu0 %v608
    %730 = vmatpush.msra.mxu0 %v606
    %731 = vmatpush.msra.mxu0 %v604
    %732 = vmatpush.msra.mxu0 %v602
    %733 = vmatpush.msra.mxu0 %v600
    %734 = vmatpush.msra.mxu0 %v598
    %735 = vmatpush.msra.mxu0 %v596
    %736 = vmatpush.msra.mxu0 %v594
    %737 = vmatpush.msra.mxu0 %v592
    %738 = vmatpush.msra.mxu0 %v590
    %739 = vmatpush.msra.mxu0 %v588
    %740 = vmatpush.msra.mxu0 %v586
    %741 = vmatpush.msra.mxu0 %v584
    %742 = vmatpush.msra.mxu0 %v582
    %743 = vmatpush.msra.mxu0 %v580
    %744 = vmatpush.msra.mxu0 %v578
    %745 = vmatmul.f32.gmra.mxu0 %v727
    %v746 = vpop.f32.mrf.mxu0
    %v747 = vadd.f32 1e-05, %v746
    %748 = vdwg.mxu0
    %749 = vmatpush.msra.mxu0 %v640
    %750 = vmatpush.msra.mxu0 %v638
    %751 = vmatpush.msra.mxu0 %v636
    %752 = vmatpush.msra.mxu0 %v634
    %753 = vmatpush.msra.mxu0 %v632
    %754 = vmatpush.msra.mxu0 %v630
    %755 = vmatpush.msra.mxu0 %v628
    %756 = vmatpush.msra.mxu0 %v626
    %757 = vmatpush.msra.mxu0 %v624
    %758 = vmatpush.msra.mxu0 %v622
    %759 = vmatpush.msra.mxu0 %v620
    %760 = vmatpush.msra.mxu0 %v618
    %761 = vmatpush.msra.mxu0 %v616
    %762 = vmatpush.msra.mxu0 %v614
    %763 = vmatpush.msra.mxu0 %v612
    %764 = vmatpush.msra.mxu0 %v610
    %765 = vmatmul.f32.gmra.mxu0 %v728
    %v766 = vpop.f32.mrf.mxu0
    %v767 = vadd.f32 %v747, %v766
    %768 = vdwg.mxu0
    %769 = vmatpush.msra.mxu0 %v609
    %770 = vmatpush.msra.mxu0 %v607
    %771 = vmatpush.msra.mxu0 %v605
    %772 = vmatpush.msra.mxu0 %v603
    %773 = vmatpush.msra.mxu0 %v601
    %774 = vmatpush.msra.mxu0 %v599
    %775 = vmatpush.msra.mxu0 %v597
    %776 = vmatpush.msra.mxu0 %v595
    %777 = vmatpush.msra.mxu0 %v593
    %778 = vmatpush.msra.mxu0 %v591
    %779 = vmatpush.msra.mxu0 %v589
    %780 = vmatpush.msra.mxu0 %v587
    %781 = vmatpush.msra.mxu0 %v585
    %782 = vmatpush.msra.mxu0 %v583
    %783 = vmatpush.msra.mxu0 %v581
    %784 = vmatpush.msra.mxu0 %v579
    %785 = vmatmul.f32.gmra.mxu0 %v727
    %v786 = vpop.f32.mrf.mxu0
    %v787 = vadd.f32 1e-05, %v786
    %788 = vdwg.mxu0
    %789 = vmatpush.msra.mxu0 %v641
    %790 = vmatpush.msra.mxu0 %v639
    %791 = vmatpush.msra.mxu0 %v637
    %792 = vmatpush.msra.mxu0 %v635
    %793 = vmatpush.msra.mxu0 %v633
    %794 = vmatpush.msra.mxu0 %v631
    %795 = vmatpush.msra.mxu0 %v629
    %796 = vmatpush.msra.mxu0 %v627
    %797 = vmatpush.msra.mxu0 %v625
    %798 = vmatpush.msra.mxu0 %v623
    %799 = vmatpush.msra.mxu0 %v621
    %800 = vmatpush.msra.mxu0 %v619
    %801 = vmatpush.msra.mxu0 %v617
    %802 = vmatpush.msra.mxu0 %v615
    %803 = vmatpush.msra.mxu0 %v613
    %804 = vmatpush.msra.mxu0 %v611
    %805 = vmatmul.f32.gmra.mxu0 %v728
    %v806 = vpop.f32.mrf.mxu0
    %v807 = vadd.f32 %v787, %v806
    %808 = vdwg.mxu0
    %v809 = vrsqrt.pop %v767
    %v810 = vmul.f32 %v809, %v767
    %v811 = vmul.f32 %v810, %v809
    %v812 = vmul.f32 0.5, %v811
    %v813 = vsub.f32 1.5, %v812
    %v814 = vmul.f32 %v809, %v813
    %vm815 = vweird.f32 %v767
    %vm816 = vweird.f32 %v809
    %vm817 = vmor %vm815, %vm816
    %v818 = vsel %vm817, %v809, %v814
    %v819 = vrsqrt.pop %v807
    %v820 = vmul.f32 %v819, %v807
    %v821 = vmul.f32 %v820, %v819
    %v822 = vmul.f32 0.5, %v821
    %v823 = vsub.f32 1.5, %v822
    %v824 = vmul.f32 %v819, %v823
    %vm825 = vweird.f32 %v807
    %vm826 = vweird.f32 %v819
    %vm827 = vmor %vm825, %vm826
    %v828 = vsel %vm827, %v819, %v824
    %v829 = vmul.f32 %v725, %v818
    %v830 = vmul.f32 %v726, %v828
    %v832 = vperm.slane %v642, 0
    %v833 = vperm.slane %v642, 1
    %v836 = vmul.f32 %v829, %v832
    %v837 = vmul.f32 %v830, %v833
    %v839 = vperm.slane %v644, 0
    %v840 = vperm.slane %v644, 1
    %v843 = vadd.f32 %v836, %v839
    %v844 = vadd.f32 %v837, %v840
    %v845 = vpack.c.bf16 %v843, %v843
    %v846 = vpack.c.bf16 %v844, %v844
    %v847 = vpack.c.bf16 %v86, %v86
    %v848 = vld [vmem:[#allocation7] sm:$0xff]
    %v849 = vld [vmem:[#allocation7 + $0x8] sm:$0xff]
    %v850 = vld [vmem:[#allocation7 + $0x10] sm:$0xff]
    %v851 = vld [vmem:[#allocation7 + $0x18] sm:$0xff]
    %v852 = vld [vmem:[#allocation7 + $0x20] sm:$0xff]
    %v853 = vld [vmem:[#allocation7 + $0x28] sm:$0xff]
    %v854 = vld [vmem:[#allocation7 + $0x30] sm:$0xff]
    %v855 = vld [vmem:[#allocation7 + $0x38] sm:$0xff]
    %v856 = vld [vmem:[#allocation7 + $0x40] sm:$0xff]
    %v857 = vld [vmem:[#allocation7 + $0x48] sm:$0xff]
    %v858 = vld [vmem:[#allocation7 + $0x50] sm:$0xff]
    %v859 = vld [vmem:[#allocation7 + $0x58] sm:$0xff]
    %v860 = vld [vmem:[#allocation7 + $0x60] sm:$0xff]
    %v861 = vld [vmem:[#allocation7 + $0x68] sm:$0xff]
    %v862 = vld [vmem:[#allocation7 + $0x70] sm:$0xff]
    %v863 = vld [vmem:[#allocation7 + $0x78] sm:$0xff]
    %v864 = vld [vmem:[#allocation7 + $0x80] sm:$0xff]
    %v865 = vld [vmem:[#allocation7 + $0x88] sm:$0xff]
    %v866 = vld [vmem:[#allocation7 + $0x90] sm:$0xff]
    %v867 = vld [vmem:[#allocation7 + $0x98] sm:$0xff]
    %v868 = vld [vmem:[#allocation7 + $0xa0] sm:$0xff]
    %v869 = vld [vmem:[#allocation7 + $0xa8] sm:$0xff]
    %v870 = vld [vmem:[#allocation7 + $0xb0] sm:$0xff]
    %v871 = vld [vmem:[#allocation7 + $0xb8] sm:$0xff]
    %v872 = vld [vmem:[#allocation7 + $0xc0] sm:$0xff]
    %v873 = vld [vmem:[#allocation7 + $0xc8] sm:$0xff]
    %v874 = vld [vmem:[#allocation7 + $0xd0] sm:$0xff]
    %v875 = vld [vmem:[#allocation7 + $0xd8] sm:$0xff]
    %v876 = vld [vmem:[#allocation7 + $0xe0] sm:$0xff]
    %v877 = vld [vmem:[#allocation7 + $0xe8] sm:$0xff]
    %v878 = vld [vmem:[#allocation7 + $0xf0] sm:$0xff]
    %v879 = vld [vmem:[#allocation7 + $0xf8] sm:$0xff]
    %v880 = vld [vmem:[#allocation7 + $0x100] sm:$0xff]
    %v881 = vld [vmem:[#allocation7 + $0x108] sm:$0xff]
    %v882 = vld [vmem:[#allocation7 + $0x110] sm:$0xff]
    %v883 = vld [vmem:[#allocation7 + $0x118] sm:$0xff]
    %v884 = vld [vmem:[#allocation7 + $0x120] sm:$0xff]
    %v885 = vld [vmem:[#allocation7 + $0x128] sm:$0xff]
    %v886 = vld [vmem:[#allocation7 + $0x130] sm:$0xff]
    %v887 = vld [vmem:[#allocation7 + $0x138] sm:$0xff]
    %v888 = vld [vmem:[#allocation7 + $0x140] sm:$0xff]
    %v889 = vld [vmem:[#allocation7 + $0x148] sm:$0xff]
    %v890 = vld [vmem:[#allocation7 + $0x150] sm:$0xff]
    %v891 = vld [vmem:[#allocation7 + $0x158] sm:$0xff]
    %v892 = vld [vmem:[#allocation7 + $0x160] sm:$0xff]
    %v893 = vld [vmem:[#allocation7 + $0x168] sm:$0xff]
    %v894 = vld [vmem:[#allocation7 + $0x170] sm:$0xff]
    %v895 = vld [vmem:[#allocation7 + $0x178] sm:$0xff]
    %v896 = vld [vmem:[#allocation7 + $0x180] sm:$0xff]
    %v897 = vld [vmem:[#allocation7 + $0x188] sm:$0xff]
    %v898 = vld [vmem:[#allocation7 + $0x190] sm:$0xff]
    %v899 = vld [vmem:[#allocation7 + $0x198] sm:$0xff]
    %v900 = vld [vmem:[#allocation7 + $0x1a0] sm:$0xff]
    %v901 = vld [vmem:[#allocation7 + $0x1a8] sm:$0xff]
    %v902 = vld [vmem:[#allocation7 + $0x1b0] sm:$0xff]
    %v903 = vld [vmem:[#allocation7 + $0x1b8] sm:$0xff]
    %v904 = vld [vmem:[#allocation7 + $0x1c0] sm:$0xff]
    %v905 = vld [vmem:[#allocation7 + $0x1c8] sm:$0xff]
    %v906 = vld [vmem:[#allocation7 + $0x1d0] sm:$0xff]
    %v907 = vld [vmem:[#allocation7 + $0x1d8] sm:$0xff]
    %v908 = vld [vmem:[#allocation7 + $0x1e0] sm:$0xff]
    %v909 = vld [vmem:[#allocation7 + $0x1e8] sm:$0xff]
    %v910 = vld [vmem:[#allocation7 + $0x1f0] sm:$0xff]
    %v911 = vld [vmem:[#allocation7 + $0x1f8] sm:$0xff]
    %v912 = vld [vmem:[#allocation7 + $0x200] sm:$0xff]
    %v913 = vld [vmem:[#allocation7 + $0x208] sm:$0xff]
    %v914 = vld [vmem:[#allocation7 + $0x210] sm:$0xff]
    %v915 = vld [vmem:[#allocation7 + $0x218] sm:$0xff]
    %v916 = vld [vmem:[#allocation7 + $0x220] sm:$0xff]
    %v917 = vld [vmem:[#allocation7 + $0x228] sm:$0xff]
    %v918 = vld [vmem:[#allocation7 + $0x230] sm:$0xff]
    %v919 = vld [vmem:[#allocation7 + $0x238] sm:$0xff]
    %v920 = vld [vmem:[%s7] sm:$0xf]
    %v993 = vunpack.c.l.b16 %v848
    %v994 = vunpack.c.h.b16 %v848
    %v995 = vunpack.c.l.b16 %v849
    %v996 = vunpack.c.h.b16 %v849
    %v997 = vunpack.c.l.b16 %v850
    %v998 = vunpack.c.h.b16 %v850
    %v999 = vunpack.c.l.b16 %v851
    %v1000 = vunpack.c.h.b16 %v851
    %v1001 = vunpack.c.l.b16 %v852
    %v1002 = vunpack.c.h.b16 %v852
    %v1003 = vunpack.c.l.b16 %v853
    %v1004 = vunpack.c.h.b16 %v853
    %v1005 = vunpack.c.l.b16 %v854
    %v1006 = vunpack.c.h.b16 %v854
    %v1007 = vunpack.c.l.b16 %v855
    %v1008 = vunpack.c.h.b16 %v855
    %v1009 = vunpack.c.l.b16 %v856
    %v1010 = vunpack.c.h.b16 %v856
    %v1011 = vunpack.c.l.b16 %v857
    %v1012 = vunpack.c.h.b16 %v857
    %v1013 = vunpack.c.l.b16 %v858
    %v1014 = vunpack.c.h.b16 %v858
    %v1015 = vunpack.c.l.b16 %v859
    %v1016 = vunpack.c.h.b16 %v859
    %v1017 = vunpack.c.l.b16 %v860
    %v1018 = vunpack.c.h.b16 %v860
    %v1019 = vunpack.c.l.b16 %v861
    %v1020 = vunpack.c.h.b16 %v861
    %v1021 = vunpack.c.l.b16 %v862
    %v1022 = vunpack.c.h.b16 %v862
    %v1023 = vunpack.c.l.b16 %v863
    %v1024 = vunpack.c.h.b16 %v863
    %v1025 = vunpack.c.l.b16 %v864
    %v1026 = vunpack.c.h.b16 %v864
    %v1027 = vunpack.c.l.b16 %v865
    %v1028 = vunpack.c.h.b16 %v865
    %v1029 = vunpack.c.l.b16 %v866
    %v1030 = vunpack.c.h.b16 %v866
    %v1031 = vunpack.c.l.b16 %v867
    %v1032 = vunpack.c.h.b16 %v867
    %v1033 = vunpack.c.l.b16 %v868
    %v1034 = vunpack.c.h.b16 %v868
    %v1035 = vunpack.c.l.b16 %v869
    %v1036 = vunpack.c.h.b16 %v869
    %v1037 = vunpack.c.l.b16 %v870
    %v1038 = vunpack.c.h.b16 %v870
    %v1039 = vunpack.c.l.b16 %v871
    %v1040 = vunpack.c.h.b16 %v871
    %v1041 = vunpack.c.l.b16 %v872
    %v1042 = vunpack.c.h.b16 %v872
    %v1043 = vunpack.c.l.b16 %v873
    %v1044 = vunpack.c.h.b16 %v873
    %v1045 = vunpack.c.l.b16 %v874
    %v1046 = vunpack.c.h.b16 %v874
    %v1047 = vunpack.c.l.b16 %v875
    %v1048 = vunpack.c.h.b16 %v875
    %v1049 = vunpack.c.l.b16 %v876
    %v1050 = vunpack.c.h.b16 %v876
    %v1051 = vunpack.c.l.b16 %v877
    %v1052 = vunpack.c.h.b16 %v877
    %v1053 = vunpack.c.l.b16 %v878
    %v1054 = vunpack.c.h.b16 %v878
    %v1055 = vunpack.c.l.b16 %v879
    %v1056 = vunpack.c.h.b16 %v879
    %v1057 = vunpack.c.l.b16 %v880
    %v1058 = vunpack.c.h.b16 %v880
    %v1059 = vunpack.c.l.b16 %v881
    %v1060 = vunpack.c.h.b16 %v881
    %v1061 = vunpack.c.l.b16 %v882
    %v1062 = vunpack.c.h.b16 %v882
    %v1063 = vunpack.c.l.b16 %v883
    %v1064 = vunpack.c.h.b16 %v883
    %v1065 = vunpack.c.l.b16 %v884
    %v1066 = vunpack.c.h.b16 %v884
    %v1067 = vunpack.c.l.b16 %v885
    %v1068 = vunpack.c.h.b16 %v885
    %v1069 = vunpack.c.l.b16 %v886
    %v1070 = vunpack.c.h.b16 %v886
    %v1071 = vunpack.c.l.b16 %v887
    %v1072 = vunpack.c.h.b16 %v887
    %v1073 = vunpack.c.l.b16 %v888
    %v1074 = vunpack.c.h.b16 %v888
    %v1075 = vunpack.c.l.b16 %v889
    %v1076 = vunpack.c.h.b16 %v889
    %v1077 = vunpack.c.l.b16 %v890
    %v1078 = vunpack.c.h.b16 %v890
    %v1079 = vunpack.c.l.b16 %v891
    %v1080 = vunpack.c.h.b16 %v891
    %v1081 = vunpack.c.l.b16 %v892
    %v1082 = vunpack.c.h.b16 %v892
    %v1083 = vunpack.c.l.b16 %v893
    %v1084 = vunpack.c.h.b16 %v893
    %v1085 = vunpack.c.l.b16 %v894
    %v1086 = vunpack.c.h.b16 %v894
    %v1087 = vunpack.c.l.b16 %v895
    %v1088 = vunpack.c.h.b16 %v895
    %v1089 = vunpack.c.l.b16 %v896
    %v1090 = vunpack.c.h.b16 %v896
    %v1091 = vunpack.c.l.b16 %v897
    %v1092 = vunpack.c.h.b16 %v897
    %v1093 = vunpack.c.l.b16 %v898
    %v1094 = vunpack.c.h.b16 %v898
    %v1095 = vunpack.c.l.b16 %v899
    %v1096 = vunpack.c.h.b16 %v899
    %v1097 = vunpack.c.l.b16 %v900
    %v1098 = vunpack.c.h.b16 %v900
    %v1099 = vunpack.c.l.b16 %v901
    %v1100 = vunpack.c.h.b16 %v901
    %v1101 = vunpack.c.l.b16 %v902
    %v1102 = vunpack.c.h.b16 %v902
    %v1103 = vunpack.c.l.b16 %v903
    %v1104 = vunpack.c.h.b16 %v903
    %v1105 = vunpack.c.l.b16 %v904
    %v1106 = vunpack.c.h.b16 %v904
    %v1107 = vunpack.c.l.b16 %v905
    %v1108 = vunpack.c.h.b16 %v905
    %v1109 = vunpack.c.l.b16 %v906
    %v1110 = vunpack.c.h.b16 %v906
    %v1111 = vunpack.c.l.b16 %v907
    %v1112 = vunpack.c.h.b16 %v907
    %v1113 = vunpack.c.l.b16 %v908
    %v1114 = vunpack.c.h.b16 %v908
    %v1115 = vunpack.c.l.b16 %v909
    %v1116 = vunpack.c.h.b16 %v909
    %v1117 = vunpack.c.l.b16 %v910
    %v1118 = vunpack.c.h.b16 %v910
    %v1119 = vunpack.c.l.b16 %v911
    %v1120 = vunpack.c.h.b16 %v911
    %v1121 = vunpack.c.l.b16 %v912
    %v1122 = vunpack.c.h.b16 %v912
    %v1123 = vunpack.c.l.b16 %v913
    %v1124 = vunpack.c.h.b16 %v913
    %v1125 = vunpack.c.l.b16 %v914
    %v1126 = vunpack.c.h.b16 %v914
    %v1127 = vunpack.c.l.b16 %v915
    %v1128 = vunpack.c.h.b16 %v915
    %v1129 = vunpack.c.l.b16 %v916
    %v1130 = vunpack.c.h.b16 %v916
    %v1131 = vunpack.c.l.b16 %v917
    %v1132 = vunpack.c.h.b16 %v917
    %v1133 = vunpack.c.l.b16 %v918
    %v1134 = vunpack.c.h.b16 %v918
    %v1135 = vunpack.c.l.b16 %v919
    %v1136 = vunpack.c.h.b16 %v919
    %v1137 = vpack.c.b16 %v997, %v993
    %v1138 = vpack.c.b16 %v998, %v994
    %v1139 = vpack.c.b16 %v999, %v995
    %v1140 = vpack.c.b16 %v1000, %v996
    %v1141 = vpack.c.b16 %v1005, %v1001
    %v1142 = vpack.c.b16 %v1006, %v1002
    %v1143 = vpack.c.b16 %v1007, %v1003
    %v1144 = vpack.c.b16 %v1008, %v1004
    %v1145 = vpack.c.b16 %v1013, %v1009
    %v1146 = vpack.c.b16 %v1014, %v1010
    %v1147 = vpack.c.b16 %v1015, %v1011
    %v1148 = vpack.c.b16 %v1016, %v1012
    %v1149 = vpack.c.b16 %v1021, %v1017
    %v1150 = vpack.c.b16 %v1022, %v1018
    %v1151 = vpack.c.b16 %v1023, %v1019
    %v1152 = vpack.c.b16 %v1024, %v1020
    %v1153 = vpack.c.b16 %v1029, %v1025
    %v1154 = vpack.c.b16 %v1030, %v1026
    %v1155 = vpack.c.b16 %v1031, %v1027
    %v1156 = vpack.c.b16 %v1032, %v1028
    %v1157 = vpack.c.b16 %v1037, %v1033
    %v1158 = vpack.c.b16 %v1038, %v1034
    %v1159 = vpack.c.b16 %v1039, %v1035
    %v1160 = vpack.c.b16 %v1040, %v1036
    %v1161 = vpack.c.b16 %v1045, %v1041
    %v1162 = vpack.c.b16 %v1046, %v1042
    %v1163 = vpack.c.b16 %v1047, %v1043
    %v1164 = vpack.c.b16 %v1048, %v1044
    %v1165 = vpack.c.b16 %v1053, %v1049
    %v1166 = vpack.c.b16 %v1054, %v1050
    %v1167 = vpack.c.b16 %v1055, %v1051
    %v1168 = vpack.c.b16 %v1056, %v1052
    %v1169 = vpack.c.b16 %v1061, %v1057
    %v1170 = vpack.c.b16 %v1062, %v1058
    %v1171 = vpack.c.b16 %v1063, %v1059
    %v1172 = vpack.c.b16 %v1064, %v1060
    %v1173 = vpack.c.b16 %v1069, %v1065
    %v1174 = vpack.c.b16 %v1070, %v1066
    %v1175 = vpack.c.b16 %v1071, %v1067
    %v1176 = vpack.c.b16 %v1072, %v1068
    %v1177 = vpack.c.b16 %v1077, %v1073
    %v1178 = vpack.c.b16 %v1078, %v1074
    %v1179 = vpack.c.b16 %v1079, %v1075
    %v1180 = vpack.c.b16 %v1080, %v1076
    %v1181 = vpack.c.b16 %v1085, %v1081
    %v1182 = vpack.c.b16 %v1086, %v1082
    %v1183 = vpack.c.b16 %v1087, %v1083
    %v1184 = vpack.c.b16 %v1088, %v1084
    %v1185 = vpack.c.b16 %v1093, %v1089
    %v1186 = vpack.c.b16 %v1094, %v1090
    %v1187 = vpack.c.b16 %v1095, %v1091
    %v1188 = vpack.c.b16 %v1096, %v1092
    %v1189 = vpack.c.b16 %v1101, %v1097
    %v1190 = vpack.c.b16 %v1102, %v1098
    %v1191 = vpack.c.b16 %v1103, %v1099
    %v1192 = vpack.c.b16 %v1104, %v1100
    %v1193 = vpack.c.b16 %v1109, %v1105
    %v1194 = vpack.c.b16 %v1110, %v1106
    %v1195 = vpack.c.b16 %v1111, %v1107
    %v1196 = vpack.c.b16 %v1112, %v1108
    %v1197 = vpack.c.b16 %v1117, %v1113
    %v1198 = vpack.c.b16 %v1118, %v1114
    %v1199 = vpack.c.b16 %v1119, %v1115
    %v1200 = vpack.c.b16 %v1120, %v1116
    %v1201 = vpack.c.b16 %v1125, %v1121
    %v1202 = vpack.c.b16 %v1126, %v1122
    %v1203 = vpack.c.b16 %v1127, %v1123
    %v1204 = vpack.c.b16 %v1128, %v1124
    %v1205 = vpack.c.b16 %v1133, %v1129
    %v1206 = vpack.c.b16 %v1134, %v1130
    %v1207 = vpack.c.b16 %v1135, %v1131
    %v1208 = vpack.c.b16 %v1136, %v1132
    %v1282 = vperm.slane %v920, 0
    %v1283 = vperm.slane %v920, 1
    %v1284 = vperm.slane %v920, 2
    %v1285 = vperm.slane %v920, 3
    %vm1290 = vcmask 261120
    %v1292 = vsel %vm1290, %v847, 0
    %1294 = vmatpush.bf16.msra.mxu0 %v1165
    %1295 = vmatpush.bf16.msra.mxu0 %v1161
    %1296 = vmatpush.bf16.msra.mxu0 %v1157
    %1297 = vmatpush.bf16.msra.mxu0 %v1153
    %1298 = vmatpush.bf16.msra.mxu0 %v1149
    %1299 = vmatpush.bf16.msra.mxu0 %v1145
    %1300 = vmatpush.bf16.msra.mxu0 %v1141
    %1301 = vmatpush.bf16.msra.mxu0 %v1137
    %1302 = vmatmul.bf16.gmra.mxu0 %v845
    %v1303 = vpop.f32.mrf.mxu0
    %v1304 = vadd.f32 %v1282, %v1303
    %v1305 = vpop.f32.mrf.mxu0
    %1306 = vdwg.mxu0
    %1307 = vmatpush.bf16.msra.mxu0 %v1197
    %1308 = vmatpush.bf16.msra.mxu0 %v1193
    %1309 = vmatpush.bf16.msra.mxu0 %v1189
    %1310 = vmatpush.bf16.msra.mxu0 %v1185
    %1311 = vmatpush.bf16.msra.mxu0 %v1181
    %1312 = vmatpush.bf16.msra.mxu0 %v1177
    %1313 = vmatpush.bf16.msra.mxu0 %v1173
    %1314 = vmatpush.bf16.msra.mxu0 %v1169
    %1315 = vmatmul.bf16.gmra.mxu0 %v846
    %v1316 = vpop.f32.mrf.mxu0
    %v1317 = vadd.f32 %v1304, %v1316
    %v1318 = vpop.f32.mrf.mxu0
    %1319 = vdwg.mxu0
    %1320 = vmatpush.bf16.msra.mxu0 0
    %1321 = vmatpush.bf16.msra.mxu0 0
    %1322 = vmatpush.bf16.msra.mxu0 0
    %1323 = vmatpush.bf16.msra.mxu0 0
    %1324 = vmatpush.bf16.msra.mxu0 0
    %1325 = vmatpush.bf16.msra.mxu0 0
    %1326 = vmatpush.bf16.msra.mxu0 %v1205
    %1327 = vmatpush.bf16.msra.mxu0 %v1201
    %1328 = vmatmul.bf16.gmra.mxu0 %v1292
    %v1329 = vpop.f32.mrf.mxu0
    %v1330 = vadd.f32 %v1317, %v1329
    %v1331 = vpop.f32.mrf.mxu0
    %1332 = vdwg.mxu0
    %1333 = vmatpush.bf16.msra.mxu0 %v1166
    %1334 = vmatpush.bf16.msra.mxu0 %v1162
    %1335 = vmatpush.bf16.msra.mxu0 %v1158
    %1336 = vmatpush.bf16.msra.mxu0 %v1154
    %1337 = vmatpush.bf16.msra.mxu0 %v1150
    %1338 = vmatpush.bf16.msra.mxu0 %v1146
    %1339 = vmatpush.bf16.msra.mxu0 %v1142
    %1340 = vmatpush.bf16.msra.mxu0 %v1138
    %1341 = vmatmul.bf16.gmra.mxu0 %v845
    %v1342 = vpop.f32.mrf.mxu0
    %v1343 = vadd.f32 %v1283, %v1342
    %v1344 = vpop.f32.mrf.mxu0
    %1345 = vdwg.mxu0
    %1346 = vmatpush.bf16.msra.mxu0 %v1198
    %1347 = vmatpush.bf16.msra.mxu0 %v1194
    %1348 = vmatpush.bf16.msra.mxu0 %v1190
    %1349 = vmatpush.bf16.msra.mxu0 %v1186
    %1350 = vmatpush.bf16.msra.mxu0 %v1182
    %1351 = vmatpush.bf16.msra.mxu0 %v1178
    %1352 = vmatpush.bf16.msra.mxu0 %v1174
    %1353 = vmatpush.bf16.msra.mxu0 %v1170
    %1354 = vmatmul.bf16.gmra.mxu0 %v846
    %v1355 = vpop.f32.mrf.mxu0
    %v1356 = vadd.f32 %v1343, %v1355
    %v1357 = vpop.f32.mrf.mxu0
    %1358 = vdwg.mxu0
    %1359 = vmatpush.bf16.msra.mxu0 0
    %1360 = vmatpush.bf16.msra.mxu0 0
    %1361 = vmatpush.bf16.msra.mxu0 0
    %1362 = vmatpush.bf16.msra.mxu0 0
    %1363 = vmatpush.bf16.msra.mxu0 0
    %1364 = vmatpush.bf16.msra.mxu0 0
    %1365 = vmatpush.bf16.msra.mxu0 %v1206
    %1366 = vmatpush.bf16.msra.mxu0 %v1202
    %1367 = vmatmul.bf16.gmra.mxu0 %v1292
    %v1368 = vpop.f32.mrf.mxu0
    %v1369 = vadd.f32 %v1356, %v1368
    %v1370 = vpop.f32.mrf.mxu0
    %1371 = vdwg.mxu0
    %1372 = vmatpush.bf16.msra.mxu0 %v1167
    %1373 = vmatpush.bf16.msra.mxu0 %v1163
    %1374 = vmatpush.bf16.msra.mxu0 %v1159
    %1375 = vmatpush.bf16.msra.mxu0 %v1155
    %1376 = vmatpush.bf16.msra.mxu0 %v1151
    %1377 = vmatpush.bf16.msra.mxu0 %v1147
    %1378 = vmatpush.bf16.msra.mxu0 %v1143
    %1379 = vmatpush.bf16.msra.mxu0 %v1139
    %1380 = vmatmul.bf16.gmra.mxu0 %v845
    %v1381 = vpop.f32.mrf.mxu0
    %v1382 = vadd.f32 %v1284, %v1381
    %v1383 = vpop.f32.mrf.mxu0
    %1384 = vdwg.mxu0
    %1385 = vmatpush.bf16.msra.mxu0 %v1199
    %1386 = vmatpush.bf16.msra.mxu0 %v1195
    %1387 = vmatpush.bf16.msra.mxu0 %v1191
    %1388 = vmatpush.bf16.msra.mxu0 %v1187
    %1389 = vmatpush.bf16.msra.mxu0 %v1183
    %1390 = vmatpush.bf16.msra.mxu0 %v1179
    %1391 = vmatpush.bf16.msra.mxu0 %v1175
    %1392 = vmatpush.bf16.msra.mxu0 %v1171
    %1393 = vmatmul.bf16.gmra.mxu0 %v846
    %v1394 = vpop.f32.mrf.mxu0
    %v1395 = vadd.f32 %v1382, %v1394
    %v1396 = vpop.f32.mrf.mxu0
    %1397 = vdwg.mxu0
    %1398 = vmatpush.bf16.msra.mxu0 0
    %1399 = vmatpush.bf16.msra.mxu0 0
    %1400 = vmatpush.bf16.msra.mxu0 0
    %1401 = vmatpush.bf16.msra.mxu0 0
    %1402 = vmatpush.bf16.msra.mxu0 0
    %1403 = vmatpush.bf16.msra.mxu0 0
    %1404 = vmatpush.bf16.msra.mxu0 %v1207
    %1405 = vmatpush.bf16.msra.mxu0 %v1203
    %1406 = vmatmul.bf16.gmra.mxu0 %v1292
    %v1407 = vpop.f32.mrf.mxu0
    %v1408 = vadd.f32 %v1395, %v1407
    %v1409 = vpop.f32.mrf.mxu0
    %1410 = vdwg.mxu0
    %1411 = vmatpush.bf16.msra.mxu0 %v1168
    %1412 = vmatpush.bf16.msra.mxu0 %v1164
    %1413 = vmatpush.bf16.msra.mxu0 %v1160
    %1414 = vmatpush.bf16.msra.mxu0 %v1156
    %1415 = vmatpush.bf16.msra.mxu0 %v1152
    %1416 = vmatpush.bf16.msra.mxu0 %v1148
    %1417 = vmatpush.bf16.msra.mxu0 %v1144
    %1418 = vmatpush.bf16.msra.mxu0 %v1140
    %1419 = vmatmul.bf16.gmra.mxu0 %v845
    %v1420 = vpop.f32.mrf.mxu0
    %v1421 = vadd.f32 %v1285, %v1420
    %v1422 = vpop.f32.mrf.mxu0
    %1423 = vdwg.mxu0
    %1424 = vmatpush.bf16.msra.mxu0 %v1200
    %1425 = vmatpush.bf16.msra.mxu0 %v1196
    %1426 = vmatpush.bf16.msra.mxu0 %v1192
    %1427 = vmatpush.bf16.msra.mxu0 %v1188
    %1428 = vmatpush.bf16.msra.mxu0 %v1184
    %1429 = vmatpush.bf16.msra.mxu0 %v1180
    %1430 = vmatpush.bf16.msra.mxu0 %v1176
    %1431 = vmatpush.bf16.msra.mxu0 %v1172
    %1432 = vmatmul.bf16.gmra.mxu0 %v846
    %v1433 = vpop.f32.mrf.mxu0
    %v1434 = vadd.f32 %v1421, %v1433
    %v1435 = vpop.f32.mrf.mxu0
    %1436 = vdwg.mxu0
    %1437 = vmatpush.bf16.msra.mxu0 0
    %1438 = vmatpush.bf16.msra.mxu0 0
    %1439 = vmatpush.bf16.msra.mxu0 0
    %1440 = vmatpush.bf16.msra.mxu0 0
    %1441 = vmatpush.bf16.msra.mxu0 0
    %1442 = vmatpush.bf16.msra.mxu0 0
    %1443 = vmatpush.bf16.msra.mxu0 %v1208
    %1444 = vmatpush.bf16.msra.mxu0 %v1204
    %1445 = vmatmul.bf16.gmra.mxu0 %v1292
    %v1446 = vpop.f32.mrf.mxu0
    %v1447 = vadd.f32 %v1434, %v1446
    %v1448 = vpop.f32.mrf.mxu0
    %1449 = vdwg.mxu0
    %v1450 = vxor.u32 %v1330, 2147483648
    %v1451 = vmul.f32 %v1450, 1.442695
    %v1452 = vpow.pop %v1451
    %v1453 = vadd.f32 %v1452, 1.0
    %v1454 = vrcp.pop %v1453
    %v1455 = vmul.f32 %v1453, %v1454
    %v1456 = vsub.f32 1.0, %v1455
    %v1457 = vmul.f32 %v1454, %v1456
    %v1458 = vadd.f32 %v1454, %v1457
    %vm1459 = vweird.f32 %v1453
    %vm1460 = vweird.f32 %v1454
    %vm1461 = vmor %vm1459, %vm1460
    %v1462 = vsel %vm1461, %v1454, %v1458
    %v1463 = vand.u32 2147483647, %v1453
    %vm1464 = vcmp.eq.f32.partialorder %v1463, 8.507059e+37
    %v1465 = vand.u32 %v1453, 2147483648
    %v1466 = vor.u32 1.1754944e-38, %v1465
    %v1467 = vsel %vm1464, %v1466, %v1462
    %v1468 = vmul.f32 1.0, %v1467
    %v1469 = vxor.u32 %v1369, 2147483648
    %v1470 = vmul.f32 %v1469, 1.442695
    %v1471 = vpow.pop %v1470
    %v1472 = vadd.f32 %v1471, 1.0
    %v1473 = vrcp.pop %v1472
    %v1474 = vmul.f32 %v1472, %v1473
    %v1475 = vsub.f32 1.0, %v1474
    %v1476 = vmul.f32 %v1473, %v1475
    %v1477 = vadd.f32 %v1473, %v1476
    %vm1478 = vweird.f32 %v1472
    %vm1479 = vweird.f32 %v1473
    %vm1480 = vmor %vm1478, %vm1479
    %v1481 = vsel %vm1480, %v1473, %v1477
    %v1482 = vand.u32 2147483647, %v1472
    %vm1483 = vcmp.eq.f32.partialorder %v1482, 8.507059e+37
    %v1484 = vand.u32 %v1472, 2147483648
    %v1485 = vor.u32 1.1754944e-38, %v1484
    %v1486 = vsel %vm1483, %v1485, %v1481
    %v1487 = vmul.f32 1.0, %v1486
    %v1488 = vtanh.pop %v1408
    %v1489 = vmul.f32 %v1468, %v1447
    %v1490 = vmul.f32 %v1487, %v1488
    %v1491 = vadd.f32 %v1490, %v1489
    %v1492 = vpack.c.bf16 %v1489, %v1489
    %v1493 = vpack.c.bf16 %v1491, %v1491
    %v1494 = vld [vmem:[%s8] sm:$0xf]
    %v1495 = vld [vmem:[%s8 + $0x4] sm:$0xf]
    %v1496 = vld [vmem:[%s8 + $0x8] sm:$0xf]
    %v1497 = vld [vmem:[%s8 + $0xc] sm:$0xf]
    %v1498 = vld [vmem:[%s8 + $0x10] sm:$0xf]
    %v1499 = vld [vmem:[%s8 + $0x14] sm:$0xf]
    %v1500 = vld [vmem:[%s8 + $0x18] sm:$0xf]
    %v1501 = vld [vmem:[%s8 + $0x1c] sm:$0xf]
    %v1502 = vld [vmem:[%s8 + $0x20] sm:$0xf]
    %v1503 = vld [vmem:[%s8 + $0x24] sm:$0xf]
    %v1504 = vld [vmem:[%s8 + $0x28] sm:$0xf]
    %v1505 = vld [vmem:[%s8 + $0x2c] sm:$0xf]
    %v1506 = vld [vmem:[%s8 + $0x30] sm:$0xf]
    %v1507 = vld [vmem:[%s8 + $0x34] sm:$0xf]
    %v1508 = vld [vmem:[%s8 + $0x38] sm:$0xf]
    %v1509 = vld [vmem:[%s8 + $0x3c] sm:$0xf]
    %v1510 = vld [vmem:[%s8 + $0x40] sm:$0xf]
    %v1511 = vld [vmem:[%s8 + $0x44] sm:$0xf]
    %v1512 = vld [vmem:[%s8 + $0x48] sm:$0xf]
    %v1513 = vld [vmem:[%s8 + $0x4c] sm:$0xf]
    %v1514 = vld [vmem:[%s8 + $0x50] sm:$0xf]
    %v1515 = vld [vmem:[%s8 + $0x54] sm:$0xf]
    %v1516 = vld [vmem:[%s8 + $0x58] sm:$0xf]
    %v1517 = vld [vmem:[%s8 + $0x5c] sm:$0xf]
    %v1518 = vld [vmem:[%s8 + $0x60] sm:$0xf]
    %v1519 = vld [vmem:[%s8 + $0x64] sm:$0xf]
    %v1520 = vld [vmem:[%s8 + $0x68] sm:$0xf]
    %v1521 = vld [vmem:[%s8 + $0x6c] sm:$0xf]
    %v1522 = vld [vmem:[%s8 + $0x70] sm:$0xf]
    %v1523 = vld [vmem:[%s8 + $0x74] sm:$0xf]
    %v1524 = vld [vmem:[%s8 + $0x78] sm:$0xf]
    %v1525 = vld [vmem:[%s8 + $0x7c] sm:$0xf]
    %v1526 = vld [vmem:[%s9] sm:$0x1]
    %v1559 = vunpack.c.l.b16 %v1494
    %v1560 = vunpack.c.l.b16 %v1495
    %v1561 = vunpack.c.l.b16 %v1496
    %v1562 = vunpack.c.l.b16 %v1497
    %v1563 = vunpack.c.l.b16 %v1498
    %v1564 = vunpack.c.l.b16 %v1499
    %v1565 = vunpack.c.l.b16 %v1500
    %v1566 = vunpack.c.l.b16 %v1501
    %v1567 = vunpack.c.l.b16 %v1502
    %v1568 = vunpack.c.l.b16 %v1503
    %v1569 = vunpack.c.l.b16 %v1504
    %v1570 = vunpack.c.l.b16 %v1505
    %v1571 = vunpack.c.l.b16 %v1506
    %v1572 = vunpack.c.l.b16 %v1507
    %v1573 = vunpack.c.l.b16 %v1508
    %v1574 = vunpack.c.l.b16 %v1509
    %v1575 = vunpack.c.l.b16 %v1510
    %v1576 = vunpack.c.l.b16 %v1511
    %v1577 = vunpack.c.l.b16 %v1512
    %v1578 = vunpack.c.l.b16 %v1513
    %v1579 = vunpack.c.l.b16 %v1514
    %v1580 = vunpack.c.l.b16 %v1515
    %v1581 = vunpack.c.l.b16 %v1516
    %v1582 = vunpack.c.l.b16 %v1517
    %v1583 = vunpack.c.l.b16 %v1518
    %v1584 = vunpack.c.l.b16 %v1519
    %v1585 = vunpack.c.l.b16 %v1520
    %v1586 = vunpack.c.l.b16 %v1521
    %v1587 = vunpack.c.l.b16 %v1522
    %v1588 = vunpack.c.l.b16 %v1523
    %v1589 = vunpack.c.l.b16 %v1524
    %v1590 = vunpack.c.l.b16 %v1525
    %v1591 = vpack.c.b16 %v1560, %v1559
    %v1592 = vpack.c.b16 %v1562, %v1561
    %v1593 = vpack.c.b16 %v1564, %v1563
    %v1594 = vpack.c.b16 %v1566, %v1565
    %v1595 = vpack.c.b16 %v1568, %v1567
    %v1596 = vpack.c.b16 %v1570, %v1569
    %v1597 = vpack.c.b16 %v1572, %v1571
    %v1598 = vpack.c.b16 %v1574, %v1573
    %v1599 = vpack.c.b16 %v1576, %v1575
    %v1600 = vpack.c.b16 %v1578, %v1577
    %v1601 = vpack.c.b16 %v1580, %v1579
    %v1602 = vpack.c.b16 %v1582, %v1581
    %v1603 = vpack.c.b16 %v1584, %v1583
    %v1604 = vpack.c.b16 %v1586, %v1585
    %v1605 = vpack.c.b16 %v1588, %v1587
    %v1606 = vpack.c.b16 %v1590, %v1589
    %1623 = vmatpush.bf16.msra.mxu0 %v1598
    %1624 = vmatpush.bf16.msra.mxu0 %v1597
    %1625 = vmatpush.bf16.msra.mxu0 %v1596
    %1626 = vmatpush.bf16.msra.mxu0 %v1595
    %1627 = vmatpush.bf16.msra.mxu0 %v1594
    %1628 = vmatpush.bf16.msra.mxu0 %v1593
    %1629 = vmatpush.bf16.msra.mxu0 %v1592
    %1630 = vmatpush.bf16.msra.mxu0 %v1591
    %1631 = vmatmul.bf16.gmra.mxu0 %v1492
    %v1632 = vpop.f32.mrf.mxu0
    %v1633 = vadd.f32 %v1526, %v1632
    %v1634 = vpop.f32.mrf.mxu0
    %1635 = vdwg.mxu0
    %1636 = vmatpush.bf16.msra.mxu0 %v1606
    %1637 = vmatpush.bf16.msra.mxu0 %v1605
    %1638 = vmatpush.bf16.msra.mxu0 %v1604
    %1639 = vmatpush.bf16.msra.mxu0 %v1603
    %1640 = vmatpush.bf16.msra.mxu0 %v1602
    %1641 = vmatpush.bf16.msra.mxu0 %v1601
    %1642 = vmatpush.bf16.msra.mxu0 %v1600
    %1643 = vmatpush.bf16.msra.mxu0 %v1599
    %1644 = vmatmul.bf16.gmra.mxu0 %v1493
    %v1645 = vpop.f32.mrf.mxu0
    %v1646 = vadd.f32 %v1633, %v1645
    %v1647 = vpop.f32.mrf.mxu0
    %1648 = vdwg.mxu0
    %v1649 = vxor.u32 %v1646, 2147483648
    %v1650 = vmul.f32 %v1649, 1.442695
    %v1651 = vpow.pop %v1650
    %v1652 = vadd.f32 %v1651, 1.0
    %v1653 = vrcp.pop %v1652
    %v1654 = vmul.f32 %v1652, %v1653
    %v1655 = vsub.f32 1.0, %v1654
    %v1656 = vmul.f32 %v1653, %v1655
    %v1657 = vadd.f32 %v1653, %v1656
    %vm1658 = vweird.f32 %v1652
    %vm1659 = vweird.f32 %v1653
    %vm1660 = vmor %vm1658, %vm1659
    %v1661 = vsel %vm1660, %v1653, %v1657
    %v1662 = vand.u32 2147483647, %v1652
    %vm1663 = vcmp.eq.f32.partialorder %v1662, 8.507059e+37
    %v1664 = vand.u32 %v1652, 2147483648
    %v1665 = vor.u32 1.1754944e-38, %v1664
    %v1666 = vsel %vm1663, %v1665, %v1661
    %v1667 = vmul.f32 1.0, %v1666
    %v1668 = vtanh.pop %v1646
    %1670 = vrot.lane.b32.xlu0 %v1668, 32
    %v1671 = vpop.permute.xlu0 %1670
    %v1673 = vmul.f32 %v1667, %v1671
    %1675 = vrot.lane.b32.xlu0 %v1673, 96
    %v1676 = vpop.permute.xlu0 %1675
    %v1679 = vrot.slane %v575, 7
    %v1680 = vrot.slane %v1676, 6
    %vm1681 = vcmask 1040384
    %v1682 = vsel %vm1681, %v577, %v1679
    %vm1683 = vcmask 1041408
    %v1684 = vsel %vm1683, %v1682, %v1680
    %v1686 = vlaneseq
    %vm1687 = vcmp.ge.s32.totalorder %v1686, 0
    %vm1688 = vcmp.lt.s32.totalorder %v1686, 288
    %vm1689 = vmand %vm1687, %vm1688
    %1690 = vst.msk [vmem:[#allocation8] sm:$0x7] %vm1689, %v1684
    // Predicated region
    $region54: #{tpu_custom_call.1} parent=1 // pred_check
      _
    $region55: #{tpu_custom_call.1} parent=1 // pred_check_branch
      %1692 = sbr.rel (0) target = $region57
    $region56: #{tpu_custom_call.1} parent=1 // pred_region
      %1694 = vsyncadd [#allocation4], 0
      %s1696 = sshll.u32 [#allocation8], 4
      %s1697 = int_to_ptr.vmem [resolvable:$true] %s1696
      %s1698 = sshll.u32 %s10, 4
      %s1699 = int_to_ptr.hbm [resolvable:$true] %s1698
      %1701 = dma.vmem_to_hbm [thread:$0]  %s1697, 48, %s1699, [#allocation4]
    $region57: #{tpu_custom_call.1} parent=1 // pred_fallthru
      _
    // Predicated region
    $region58: #{tpu_custom_call.1} parent=1 // pred_check
      _
    $region59: #{tpu_custom_call.1} parent=1 // pred_check_branch
      %1703 = sbr.rel (0) target = $region61
    $region60: #{tpu_custom_call.1} parent=1 // pred_region
      %1705 = dma.done [#allocation4], 48
    $region61: #{tpu_custom_call.1} parent=1 // pred_fallthru
      _
    %1706 = vsyncpa [#allocation3], 1
    %1707 = vsyncpa [#allocation6], 1
    %1708 = vsyncpa [#allocation4], 1

</llo_original>
